<compile_context>
chip_gen: v7x
topology: tpu7x:2x2x1
jax: 0.10.0
libtpu: 0.0.40
codegen_flags: <defaults>
</compile_context>

<pallas_src>
import jax
import jax.numpy as jnp
from jax.experimental import pallas as pl
from jax.experimental.pallas import tpu as pltpu

LN_EPS = 1e-5  # PyTorch nn.LayerNorm default


def _ln_normalize(x):
    """LayerNorm without affine (the affine is folded into the Linear weights)."""
    mu = jnp.mean(x, axis=-1, keepdims=True)
    xc = x - mu
    var = jnp.mean(xc * xc, axis=-1, keepdims=True)
    return xc * jax.lax.rsqrt(var + LN_EPS)


def mlp_kernel(x_ref, w1_ref, b1_ref, w2_ref, b2_ref, o_ref):
    x = x_ref[...].astype(jnp.float32)

    # LayerNorm(visual_dim) -- normalize only (gamma/beta folded into w1/b1)
    xn = _ln_normalize(x)

    # Linear(visual_dim, visual_dim*mlp_ratio) + ReLU  (bf16 MXU, f32 accumulate)
    h = jnp.dot(xn.astype(w1_ref.dtype), w1_ref[...],
                preferred_element_type=jnp.float32) + b1_ref[...]
    h = jnp.maximum(h, 0.0)

    # LayerNorm(visual_dim*mlp_ratio) -- normalize only (affine folded into w2/b2)
    hn = _ln_normalize(h)

    # Linear(visual_dim*mlp_ratio, visual_dim)
    out = jnp.dot(hn.astype(w2_ref.dtype), w2_ref[...],
                  preferred_element_type=jnp.float32) + b2_ref[...]
    o_ref[...] = out.astype(o_ref.dtype)


def fold_params(params, matmul_dtype=jnp.bfloat16):
    """Fold the LayerNorm affines into the Linear weights/biases (in f32), then cast
    the matmul weights to the MXU dtype.  Call once; reuse across mlp_forward calls."""
    g1 = params["ln1_g"].reshape(-1)          # (D,)
    b1 = params["ln1_b"].reshape(1, -1)       # (1, D)
    g2 = params["ln2_g"].reshape(-1)          # (H,)
    b2 = params["ln2_b"].reshape(1, -1)       # (1, H)
    w1 = params["w1"]                         # (D, H)
    w2 = params["w2"]                         # (H, D)
    return {
        "w1": (w1 * g1[:, None]).astype(matmul_dtype),
        "b1": (b1 @ w1 + params["b1"]).astype(jnp.float32),   # (1, H)
        "w2": (w2 * g2[:, None]).astype(matmul_dtype),
        "b2": (b2 @ w2 + params["b2"]).astype(jnp.float32),   # (1, D)
    }


def _vmem_cap_bytes():
    try:
        cap = pltpu.get_tpu_info().vmem_capacity_bytes
    except Exception:
        cap = 64 << 20          # v7x per-TC VMEM; safe floor for all current gens
    return int(cap * 0.85)      # leave headroom for compiler scratch / spills


def _choose_block_b(B, D, H, vmem_cap):
    # Rough per-row f32 working bytes in one grid step (x/xn/out + h/hn).
    row_bytes = (3 * D + 2 * H) * 4
    cap = 256                                 # MXU tile height
    budget = min(8 << 20, vmem_cap // 4)      # per-step intermediates budget
    while cap < 1024 and 2 * cap * row_bytes <= budget:
        cap *= 2                              # amortize ~0.35us per-step overhead
    n_tiles = pl.cdiv(B, cap)
    if n_tiles == 1 and B > 8:
        n_tiles = 2                           # >=2 grid steps -> both v7x TCs get work
    return ((pl.cdiv(B, n_tiles) + 7) // 8) * 8


def mlp_forward(x, folded, *, block_b=None, single_buffer_weights=True):
    """x: (B, D) float32.  folded: output of fold_params()."""
    B, D = x.shape
    H = folded["w1"].shape[1]
    wdtype = folded["w1"].dtype
    wbytes = jnp.dtype(wdtype).itemsize
    vmem_cap = _vmem_cap_bytes()

    if block_b is None:
        block_b = _choose_block_b(B, D, H, vmem_cap)

    def vmem_est(bb, nbuf):
        return (2 * 2 * bb * D * 4                 # x + out tiles (double-buffered, f32)
                + nbuf * 2 * D * H * wbytes        # w1 + w2 (grid-resident)
                + nbuf * (H + D) * 4               # folded biases
                + bb * (2 * D + 2 * H) * 4)        # xn / h / hn / out intermediates

    # Safety: shrink the batch tile if a conservative estimate would not fit.
    while block_b > 8 and 2 * vmem_est(block_b, 2) > vmem_cap:
        block_b = max(8, ((block_b // 2 + 7) // 8) * 8)

    n_tiles = pl.cdiv(B, block_b)
    B_pad = n_tiles * block_b
    # With balanced tiles padding is < 8*n_tiles rows (negligible vs B).
    x_in = jnp.pad(x, ((0, B_pad - B), (0, 0))) if B_pad != B else x

    def run(nbuf):
        vmem_limit = int(min(max(2 * vmem_est(block_b, nbuf), 8 << 20), vmem_cap))
        if nbuf == 1:
            def const_spec(shape):
                # Constant-index blocks: one buffer is enough (never re-fetched).
                return pl.BlockSpec(shape, lambda i: (0, 0),
                                    pipeline_mode=pl.Buffered(1))
        else:
            def const_spec(shape):
                return pl.BlockSpec(shape, lambda i: (0, 0))

        return pl.pallas_call(
            mlp_kernel,
            out_shape=jax.ShapeDtypeStruct((B_pad, D), x.dtype),
            grid_spec=pltpu.PrefetchScalarGridSpec(
                num_scalar_prefetch=0,
                grid=(n_tiles,),
                in_specs=[
                    pl.BlockSpec((block_b, D), lambda i: (i, 0)),   # x
                    const_spec((D, H)),                             # folded w1 (in, out)
                    const_spec((1, H)),                             # folded bias1
                    const_spec((H, D)),                             # folded w2 (in, out)
                    const_spec((1, D)),                             # folded bias2
                ],
                out_specs=pl.BlockSpec((block_b, D), lambda i: (i, 0)),
            ),
            compiler_params=pltpu.CompilerParams(
                dimension_semantics=("parallel",),   # shards batch tiles over v7x TCs
                vmem_limit_bytes=vmem_limit,
            ),
        )(x_in, folded["w1"], folded["b1"], folded["w2"], folded["b2"])

    if single_buffer_weights:
        try:
            out = run(1)
        except Exception:
            # Narrow fallback: jax versions without BlockSpec(pipeline_mode=...).
            out = run(2)
    else:
        out = run(2)

    return out[:B] if B_pad != B else out


def init_params(key, visual_dim, mlp_ratio):
    """Matches MLP._init_weights: trunc_normal(std=0.02) for Linear weights,
    zeros for Linear biases, ones/zeros for LayerNorm weight/bias."""
    hidden = visual_dim * mlp_ratio
    k1, k2 = jax.random.split(key)

    def trunc_normal(k, shape, std=0.02):
        return std * jax.random.truncated_normal(k, -2.0, 2.0, shape, jnp.float32)

    # PyTorch Linear weight is (out, in); store transposed (in, out) for the kernel.
    w1_torch = trunc_normal(k1, (hidden, visual_dim))
    w2_torch = trunc_normal(k2, (visual_dim, hidden))
    return {
        "ln1_g": jnp.ones((1, visual_dim), jnp.float32),
        "ln1_b": jnp.zeros((1, visual_dim), jnp.float32),
        "w1": jnp.transpose(w1_torch),                      # (D, H)
        "b1": jnp.zeros((1, hidden), jnp.float32),
        "ln2_g": jnp.ones((1, hidden), jnp.float32),
        "ln2_b": jnp.zeros((1, hidden), jnp.float32),
        "w2": jnp.transpose(w2_torch),                      # (H, D)
        "b2": jnp.zeros((1, visual_dim), jnp.float32),
    }


def mlp_reference_folded(x, folded):
    """Pure-JAX mirror of the exact kernel math (folded affine, bf16 matmul, f32 acc)."""
    xn = _ln_normalize(x.astype(jnp.float32))
    h = jnp.dot(xn.astype(folded["w1"].dtype), folded["w1"],
                preferred_element_type=jnp.float32) + folded["b1"]
    h = jnp.maximum(h, 0.0)
    hn = _ln_normalize(h)
    return jnp.dot(hn.astype(folded["w2"].dtype), folded["w2"],
                   preferred_element_type=jnp.float32) + folded["b2"]


def mlp_reference_f32(x, p):
    """Unfolded full-f32 math in the original PyTorch op order (loose sanity check)."""
    def ln(v, g, b):
        mu = jnp.mean(v, axis=-1, keepdims=True)
        vc = v - mu
        var = jnp.mean(vc * vc, axis=-1, keepdims=True)
        return vc * jax.lax.rsqrt(var + LN_EPS) * g + b
    xn = ln(x, p["ln1_g"], p["ln1_b"])
    h = jnp.maximum(xn @ p["w1"] + p["b1"], 0.0)
    hn = ln(h, p["ln2_g"], p["ln2_b"])
    return hn @ p["w2"] + p["b2"]


if __name__ == "__main__":
    # Small shapes consistent with the module: visual_dim=128, mlp_ratio=4.
    # batch=12 (not a multiple of 8) exercises the balanced-tile padding path
    # and still yields 2 grid steps (megacore path).
    visual_dim, mlp_ratio, batch = 128, 4, 12

    key = jax.random.PRNGKey(0)
    kx, kp = jax.random.split(key)
    x = jax.random.normal(kx, (batch, visual_dim), jnp.float32)
    params = init_params(kp, visual_dim, mlp_ratio)
    folded = fold_params(params)

    out = jax.block_until_ready(mlp_forward(x, folded))
    assert out.shape == (batch, visual_dim)

    ref = mlp_reference_folded(x, folded)        # primary check: same math as kernel
    assert jnp.allclose(out, ref, atol=2e-3, rtol=2e-3), "mismatch vs folded bf16 reference"

    ref32 = mlp_reference_f32(x, params)         # sanity check vs full-f32 PyTorch math
    assert jnp.allclose(out, ref32, atol=5e-2, rtol=5e-2), "mismatch vs f32 reference"

    print("KERNEL_OK")
</pallas_src>

<mosaic_0001>
module attributes {stable_mosaic.version = 11 : i64} {
  func.func @mlp_kernel(%arg0: i32, %arg1: memref<8x128xf32, #tpu.memory_space<vmem>>, %arg2: memref<128x512xbf16, #tpu.memory_space<vmem>>, %arg3: memref<1x512xf32, #tpu.memory_space<vmem>>, %arg4: memref<512x128xbf16, #tpu.memory_space<vmem>>, %arg5: memref<1x128xf32, #tpu.memory_space<vmem>>, %arg6: memref<8x128xf32, #tpu.memory_space<vmem>>) attributes {dimension_semantics = [#tpu.dimension_semantics<parallel>], iteration_bounds = array<i64: 2>, scalar_prefetch = 0 : i64, scratch_operands = 0 : i64, tpu.core_type = #tpu.core_type<tc>, window_params = [{transform_indices = @transform_0, window_bounds = array<i64: 8, 128>}, {pipeline_mode = #tpu.pipeline_mode<synchronous>, transform_indices = @transform_1, window_bounds = array<i64: 128, 512>}, {pipeline_mode = #tpu.pipeline_mode<synchronous>, transform_indices = @transform_2, window_bounds = array<i64: 1, 512>}, {pipeline_mode = #tpu.pipeline_mode<synchronous>, transform_indices = @transform_3, window_bounds = array<i64: 512, 128>}, {pipeline_mode = #tpu.pipeline_mode<synchronous>, transform_indices = @transform_4, window_bounds = array<i64: 1, 128>}, {transform_indices = @transform_5, window_bounds = array<i64: 8, 128>}]} {
    %c0 = arith.constant 0 : index
    %c0_0 = arith.constant 0 : index
    %0 = vector.load %arg1[%c0, %c0_0] : memref<8x128xf32, #tpu.memory_space<vmem>>, vector<8x128xf32>
    %cst = arith.constant dense<0.000000e+00> : vector<8xf32>
    %1 = vector.multi_reduction <add>, %0, %cst [1] : vector<8x128xf32> to vector<8xf32>
    %2 = vector.shape_cast %1 : vector<8xf32> to vector<8x1xf32>
    %cst_1 = arith.constant 1.280000e+02 : f32
    %3 = vector.broadcast %cst_1 : f32 to vector<8x1xf32>
    %4 = arith.divf %2, %3 : vector<8x1xf32>
    %5 = vector.broadcast %4 : vector<8x1xf32> to vector<8x128xf32>
    %6 = arith.subf %0, %5 : vector<8x128xf32>
    %7 = arith.mulf %6, %6 : vector<8x128xf32>
    %cst_2 = arith.constant dense<0.000000e+00> : vector<8xf32>
    %8 = vector.multi_reduction <add>, %7, %cst_2 [1] : vector<8x128xf32> to vector<8xf32>
    %9 = vector.shape_cast %8 : vector<8xf32> to vector<8x1xf32>
    %cst_3 = arith.constant 1.280000e+02 : f32
    %10 = vector.broadcast %cst_3 : f32 to vector<8x1xf32>
    %11 = arith.divf %9, %10 : vector<8x1xf32>
    %cst_4 = arith.constant 9.99999974E-6 : f32
    %12 = vector.broadcast %cst_4 : f32 to vector<8x1xf32>
    %13 = arith.addf %11, %12 : vector<8x1xf32>
    %14 = math.rsqrt %13 : vector<8x1xf32>
    %15 = vector.broadcast %14 : vector<8x1xf32> to vector<8x128xf32>
    %16 = arith.mulf %6, %15 : vector<8x128xf32>
    %17 = arith.truncf %16 : vector<8x128xf32> to vector<8x128xbf16>
    %c0_5 = arith.constant 0 : index
    %c0_6 = arith.constant 0 : index
    %18 = vector.load %arg2[%c0_5, %c0_6] : memref<128x512xbf16, #tpu.memory_space<vmem>>, vector<128x512xbf16>
    %cst_7 = arith.constant dense<0.000000e+00> : vector<8x512xf32>
    %19 = tpu.matmul %17, %18, %cst_7 {dimension_numbers = #tpu.dot_dimension_numbers<[1], [0], [0], [1], [0, 0, 1, 1], [], []>} : vector<8x128xbf16>, vector<128x512xbf16>, vector<8x512xf32> -> vector<8x512xf32>
    %c0_8 = arith.constant 0 : index
    %c0_9 = arith.constant 0 : index
    %20 = vector.load %arg3[%c0_8, %c0_9] : memref<1x512xf32, #tpu.memory_space<vmem>>, vector<1x512xf32>
    %21 = vector.broadcast %20 : vector<1x512xf32> to vector<8x512xf32>
    %22 = arith.addf %19, %21 : vector<8x512xf32>
    %cst_10 = arith.constant 0.000000e+00 : f32
    %23 = vector.broadcast %cst_10 : f32 to vector<8x512xf32>
    %24 = arith.maximumf %22, %23 : vector<8x512xf32>
    %cst_11 = arith.constant dense<0.000000e+00> : vector<8xf32>
    %25 = vector.multi_reduction <add>, %24, %cst_11 [1] : vector<8x512xf32> to vector<8xf32>
    %26 = vector.shape_cast %25 : vector<8xf32> to vector<8x1xf32>
    %cst_12 = arith.constant 5.120000e+02 : f32
    %27 = vector.broadcast %cst_12 : f32 to vector<8x1xf32>
    %28 = arith.divf %26, %27 : vector<8x1xf32>
    %29 = vector.broadcast %28 : vector<8x1xf32> to vector<8x512xf32>
    %30 = arith.subf %24, %29 : vector<8x512xf32>
    %31 = arith.mulf %30, %30 : vector<8x512xf32>
    %cst_13 = arith.constant dense<0.000000e+00> : vector<8xf32>
    %32 = vector.multi_reduction <add>, %31, %cst_13 [1] : vector<8x512xf32> to vector<8xf32>
    %33 = vector.shape_cast %32 : vector<8xf32> to vector<8x1xf32>
    %cst_14 = arith.constant 5.120000e+02 : f32
    %34 = vector.broadcast %cst_14 : f32 to vector<8x1xf32>
    %35 = arith.divf %33, %34 : vector<8x1xf32>
    %cst_15 = arith.constant 9.99999974E-6 : f32
    %36 = vector.broadcast %cst_15 : f32 to vector<8x1xf32>
    %37 = arith.addf %35, %36 : vector<8x1xf32>
    %38 = math.rsqrt %37 : vector<8x1xf32>
    %39 = vector.broadcast %38 : vector<8x1xf32> to vector<8x512xf32>
    %40 = arith.mulf %30, %39 : vector<8x512xf32>
    %41 = arith.truncf %40 : vector<8x512xf32> to vector<8x512xbf16>
    %c0_16 = arith.constant 0 : index
    %c0_17 = arith.constant 0 : index
    %42 = vector.load %arg4[%c0_16, %c0_17] : memref<512x128xbf16, #tpu.memory_space<vmem>>, vector<512x128xbf16>
    %cst_18 = arith.constant dense<0.000000e+00> : vector<8x128xf32>
    %43 = tpu.matmul %41, %42, %cst_18 {dimension_numbers = #tpu.dot_dimension_numbers<[1], [0], [0], [1], [0, 0, 1, 1], [], []>} : vector<8x512xbf16>, vector<512x128xbf16>, vector<8x128xf32> -> vector<8x128xf32>
    %c0_19 = arith.constant 0 : index
    %c0_20 = arith.constant 0 : index
    %44 = vector.load %arg5[%c0_19, %c0_20] : memref<1x128xf32, #tpu.memory_space<vmem>>, vector<1x128xf32>
    %45 = vector.broadcast %44 : vector<1x128xf32> to vector<8x128xf32>
    %46 = arith.addf %43, %45 : vector<8x128xf32>
    %c0_21 = arith.constant 0 : index
    %c0_22 = arith.constant 0 : index
    %47 = vector.load %arg6[%c0_21, %c0_22] : memref<8x128xf32, #tpu.memory_space<vmem>>, vector<8x128xf32>
    tpu.vector_store %arg6[%c0_21, %c0_22], %46 {strides = array<i32>} : memref<8x128xf32, #tpu.memory_space<vmem>>, vector<8x128xf32>,
    return
  }
  func.func @transform_0(%arg0: i32) -> (i32, i32) {
    %c0_i32 = arith.constant 0 : i32
    %c0_i32_0 = arith.constant 0 : i32
    return %arg0, %c0_i32 : i32, i32
  }
  func.func @transform_1(%arg0: i32) -> (i32, i32) {
    %c0_i32 = arith.constant 0 : i32
    %c0_i32_0 = arith.constant 0 : i32
    %c0_i32_1 = arith.constant 0 : i32
    return %c0_i32, %c0_i32_0 : i32, i32
  }
  func.func @transform_2(%arg0: i32) -> (i32, i32) {
    %c0_i32 = arith.constant 0 : i32
    %c0_i32_0 = arith.constant 0 : i32
    %c0_i32_1 = arith.constant 0 : i32
    return %c0_i32, %c0_i32_0 : i32, i32
  }
  func.func @transform_3(%arg0: i32) -> (i32, i32) {
    %c0_i32 = arith.constant 0 : i32
    %c0_i32_0 = arith.constant 0 : i32
    %c0_i32_1 = arith.constant 0 : i32
    return %c0_i32, %c0_i32_0 : i32, i32
  }
  func.func @transform_4(%arg0: i32) -> (i32, i32) {
    %c0_i32 = arith.constant 0 : i32
    %c0_i32_0 = arith.constant 0 : i32
    %c0_i32_1 = arith.constant 0 : i32
    return %c0_i32, %c0_i32_0 : i32, i32
  }
  func.func @transform_5(%arg0: i32) -> (i32, i32) {
    %c0_i32 = arith.constant 0 : i32
    %c0_i32_0 = arith.constant 0 : i32
    return %arg0, %c0_i32 : i32, i32
  }
}

module attributes {stable_mosaic.version = 11 : i64} {
  func.func @mlp_kernel(%arg0: i32, %arg1: memref<8x128xf32, #tpu.memory_space<vmem>>, %arg2: memref<128x512xbf16, #tpu.memory_space<vmem>>, %arg3: memref<1x512xf32, #tpu.memory_space<vmem>>, %arg4: memref<512x128xbf16, #tpu.memory_space<vmem>>, %arg5: memref<1x128xf32, #tpu.memory_space<vmem>>, %arg6: memref<8x128xf32, #tpu.memory_space<vmem>>) attributes {dimension_semantics = [#tpu.dimension_semantics<parallel>], iteration_bounds = array<i64: 2>, scalar_prefetch = 0 : i64, scratch_operands = 0 : i64, tpu.core_type = #tpu.core_type<tc>, window_params = [{transform_indices = @transform_0, window_bounds = array<i64: 8, 128>}, {pipeline_mode = #tpu.pipeline_mode<synchronous>, transform_indices = @transform_1, window_bounds = array<i64: 128, 512>}, {pipeline_mode = #tpu.pipeline_mode<synchronous>, transform_indices = @transform_2, window_bounds = array<i64: 1, 512>}, {pipeline_mode = #tpu.pipeline_mode<synchronous>, transform_indices = @transform_3, window_bounds = array<i64: 512, 128>}, {pipeline_mode = #tpu.pipeline_mode<synchronous>, transform_indices = @transform_4, window_bounds = array<i64: 1, 128>}, {transform_indices = @transform_5, window_bounds = array<i64: 8, 128>}]} {
    %c0 = arith.constant 0 : index
    %c0_0 = arith.constant 0 : index
    %0 = vector.load %arg1[%c0, %c0_0] : memref<8x128xf32, #tpu.memory_space<vmem>>, vector<8x128xf32>
    %cst = arith.constant dense<0.000000e+00> : vector<8xf32>
    %1 = vector.multi_reduction <add>, %0, %cst [1] : vector<8x128xf32> to vector<8xf32>
    %2 = vector.shape_cast %1 : vector<8xf32> to vector<8x1xf32>
    %cst_1 = arith.constant 1.280000e+02 : f32
    %3 = vector.broadcast %cst_1 : f32 to vector<8x1xf32>
    %4 = arith.divf %2, %3 : vector<8x1xf32>
    %5 = vector.broadcast %4 : vector<8x1xf32> to vector<8x128xf32>
    %6 = arith.subf %0, %5 : vector<8x128xf32>
    %7 = arith.mulf %6, %6 : vector<8x128xf32>
    %cst_2 = arith.constant dense<0.000000e+00> : vector<8xf32>
    %8 = vector.multi_reduction <add>, %7, %cst_2 [1] : vector<8x128xf32> to vector<8xf32>
    %9 = vector.shape_cast %8 : vector<8xf32> to vector<8x1xf32>
    %cst_3 = arith.constant 1.280000e+02 : f32
    %10 = vector.broadcast %cst_3 : f32 to vector<8x1xf32>
    %11 = arith.divf %9, %10 : vector<8x1xf32>
    %cst_4 = arith.constant 9.99999974E-6 : f32
    %12 = vector.broadcast %cst_4 : f32 to vector<8x1xf32>
    %13 = arith.addf %11, %12 : vector<8x1xf32>
    %14 = math.rsqrt %13 : vector<8x1xf32>
    %15 = vector.broadcast %14 : vector<8x1xf32> to vector<8x128xf32>
    %16 = arith.mulf %6, %15 : vector<8x128xf32>
    %17 = arith.truncf %16 : vector<8x128xf32> to vector<8x128xbf16>
    %c0_5 = arith.constant 0 : index
    %c0_6 = arith.constant 0 : index
    %18 = vector.load %arg2[%c0_5, %c0_6] : memref<128x512xbf16, #tpu.memory_space<vmem>>, vector<128x512xbf16>
    %cst_7 = arith.constant dense<0.000000e+00> : vector<8x512xf32>
    %19 = tpu.matmul %17, %18, %cst_7 {dimension_numbers = #tpu.dot_dimension_numbers<[1], [0], [0], [1], [0, 0, 1, 1], [], []>} : vector<8x128xbf16>, vector<128x512xbf16>, vector<8x512xf32> -> vector<8x512xf32>
    %c0_8 = arith.constant 0 : index
    %c0_9 = arith.constant 0 : index
    %20 = vector.load %arg3[%c0_8, %c0_9] : memref<1x512xf32, #tpu.memory_space<vmem>>, vector<1x512xf32>
    %21 = vector.broadcast %20 : vector<1x512xf32> to vector<8x512xf32>
    %22 = arith.addf %19, %21 : vector<8x512xf32>
    %cst_10 = arith.constant 0.000000e+00 : f32
    %23 = vector.broadcast %cst_10 : f32 to vector<8x512xf32>
    %24 = arith.maximumf %22, %23 : vector<8x512xf32>
    %cst_11 = arith.constant dense<0.000000e+00> : vector<8xf32>
    %25 = vector.multi_reduction <add>, %24, %cst_11 [1] : vector<8x512xf32> to vector<8xf32>
    %26 = vector.shape_cast %25 : vector<8xf32> to vector<8x1xf32>
    %cst_12 = arith.constant 5.120000e+02 : f32
    %27 = vector.broadcast %cst_12 : f32 to vector<8x1xf32>
    %28 = arith.divf %26, %27 : vector<8x1xf32>
    %29 = vector.broadcast %28 : vector<8x1xf32> to vector<8x512xf32>
    %30 = arith.subf %24, %29 : vector<8x512xf32>
    %31 = arith.mulf %30, %30 : vector<8x512xf32>
    %cst_13 = arith.constant dense<0.000000e+00> : vector<8xf32>
    %32 = vector.multi_reduction <add>, %31, %cst_13 [1] : vector<8x512xf32> to vector<8xf32>
    %33 = vector.shape_cast %32 : vector<8xf32> to vector<8x1xf32>
    %cst_14 = arith.constant 5.120000e+02 : f32
    %34 = vector.broadcast %cst_14 : f32 to vector<8x1xf32>
    %35 = arith.divf %33, %34 : vector<8x1xf32>
    %cst_15 = arith.constant 9.99999974E-6 : f32
    %36 = vector.broadcast %cst_15 : f32 to vector<8x1xf32>
    %37 = arith.addf %35, %36 : vector<8x1xf32>
    %38 = math.rsqrt %37 : vector<8x1xf32>
    %39 = vector.broadcast %38 : vector<8x1xf32> to vector<8x512xf32>
    %40 = arith.mulf %30, %39 : vector<8x512xf32>
    %41 = arith.truncf %40 : vector<8x512xf32> to vector<8x512xbf16>
    %c0_16 = arith.constant 0 : index
    %c0_17 = arith.constant 0 : index
    %42 = vector.load %arg4[%c0_16, %c0_17] : memref<512x128xbf16, #tpu.memory_space<vmem>>, vector<512x128xbf16>
    %cst_18 = arith.constant dense<0.000000e+00> : vector<8x128xf32>
    %43 = tpu.matmul %41, %42, %cst_18 {dimension_numbers = #tpu.dot_dimension_numbers<[1], [0], [0], [1], [0, 0, 1, 1], [], []>} : vector<8x512xbf16>, vector<512x128xbf16>, vector<8x128xf32> -> vector<8x128xf32>
    %c0_19 = arith.constant 0 : index
    %c0_20 = arith.constant 0 : index
    %44 = vector.load %arg5[%c0_19, %c0_20] : memref<1x128xf32, #tpu.memory_space<vmem>>, vector<1x128xf32>
    %45 = vector.broadcast %44 : vector<1x128xf32> to vector<8x128xf32>
    %46 = arith.addf %43, %45 : vector<8x128xf32>
    %c0_21 = arith.constant 0 : index
    %c0_22 = arith.constant 0 : index
    %47 = vector.load %arg6[%c0_21, %c0_22] : memref<8x128xf32, #tpu.memory_space<vmem>>, vector<8x128xf32>
    tpu.vector_store %arg6[%c0_21, %c0_22], %46 {strides = array<i32>} : memref<8x128xf32, #tpu.memory_space<vmem>>, vector<8x128xf32>,
    return
  }
  func.func @transform_0(%arg0: i32) -> (i32, i32) {
    %c0_i32 = arith.constant 0 : i32
    %c0_i32_0 = arith.constant 0 : i32
    return %arg0, %c0_i32 : i32, i32
  }
  func.func @transform_1(%arg0: i32) -> (i32, i32) {
    %c0_i32 = arith.constant 0 : i32
    %c0_i32_0 = arith.constant 0 : i32
    %c0_i32_1 = arith.constant 0 : i32
    return %c0_i32, %c0_i32_0 : i32, i32
  }
  func.func @transform_2(%arg0: i32) -> (i32, i32) {
    %c0_i32 = arith.constant 0 : i32
    %c0_i32_0 = arith.constant 0 : i32
    %c0_i32_1 = arith.constant 0 : i32
    return %c0_i32, %c0_i32_0 : i32, i32
  }
  func.func @transform_3(%arg0: i32) -> (i32, i32) {
    %c0_i32 = arith.constant 0 : i32
    %c0_i32_0 = arith.constant 0 : i32
    %c0_i32_1 = arith.constant 0 : i32
    return %c0_i32, %c0_i32_0 : i32, i32
  }
  func.func @transform_4(%arg0: i32) -> (i32, i32) {
    %c0_i32 = arith.constant 0 : i32
    %c0_i32_0 = arith.constant 0 : i32
    %c0_i32_1 = arith.constant 0 : i32
    return %c0_i32, %c0_i32_0 : i32, i32
  }
  func.func @transform_5(%arg0: i32) -> (i32, i32) {
    %c0_i32 = arith.constant 0 : i32
    %c0_i32_0 = arith.constant 0 : i32
    return %arg0, %c0_i32 : i32, i32
  }
}

</mosaic_0001>

<llo_original>
// kernel: tpu_custom_call.1
$region0: #{tpu_custom_call.1}
  #allocation0 [shape = 'u32[]', space=smem, size = 0x4, offset = 0x4, fixed_abs, tag = 'smem constant byte address 0x4 - core index']
  #allocation1 [shape = 'u32[144,128]{1,0:T(1,128)}', space=vmem, size = 0x12000, scoped, tag = 'internal scratch']
  %s0 = inlined_call_operand.hbm [shape: f32[16,128], index: 0, kind: input, shape index: {}]
  %s1 = inlined_call_operand.hbm [shape: bf16[128,512], index: 1, kind: input, shape index: {}]
  %s2 = inlined_call_operand.vmem [shape: f32[1,512], index: 2, kind: input, shape index: {}]
  %s3 = inlined_call_operand.hbm [shape: bf16[512,128], index: 3, kind: input, shape index: {}]
  %s4 = inlined_call_operand.vmem [shape: f32[1,128], index: 4, kind: input, shape index: {}]
  %s5 = inlined_call_operand.hbm [shape: f32[16,128], index: 5, kind: output, shape index: {}]
  %s6 = sld [smem:[#allocation0]]
  $region65: #{tpu_custom_call.1} parent=0
    _
  %s8 = ssub.s32 1, %s6
  %s9 = scalar_select 0, %s8, %s6
  $region1: #{tpu_custom_call.1} parent=0
    #allocation2 [shape = 'u8[8192]{0}', space=vmem, size = 0x2000, scoped, tag = 'input window, operand 0']
    #allocation3 [shape = 's32[2]{0}', space=sflag, size = 0x8, scoped, tag = 'scoped memory for tpu_custom_call.1']
    #allocation4 [shape = 's32[2]{0}', space=sflag, size = 0x8, scoped, tag = 'scoped memory for tpu_custom_call.1']
    #allocation5 [shape = 'u8[131072]{0}', space=vmem, size = 0x20000, scoped, tag = 'input window, operand 1, single buffered']
    #allocation6 [shape = 's32[1]{0}', space=sflag, size = 0x4, scoped, tag = 'scoped memory for tpu_custom_call.1']
    #allocation7 [shape = 'u8[131072]{0}', space=vmem, size = 0x20000, scoped, tag = 'input window, operand 3, single buffered']
    #allocation8 [shape = 'u8[8192]{0}', space=vmem, size = 0x2000, scoped, tag = 'output window, operand 0']
    %10 = vsyncpa [#allocation3], 0
    %s11 = scalar_lea.sflag [#allocation3], 1
    %12 = vsyncpa %s11, 0
    %13 = vsyncpa [#allocation6], 0
    %14 = vsyncpa [#allocation4], 0
    %s15 = scalar_lea.sflag [#allocation4], 1
    %16 = vsyncpa %s15, 0
    loop: start=0, step=1, limit=4
    $region2: #{tpu_custom_call.1} parent=1 // loop_pre_header
      _
    $region3: #{tpu_custom_call.1} parent=1 // loop_header
      %s18 = sphi 0, %s22
      %p19 = scmp.ge.s32.totalorder %s18, 4
      %s28 = sphi 0, %s30
      %s31 = sphi 0, %s28
      %s32 = sphi 0, %s31
      %s48 = sphi 0, %s32
      %s52 = sphi 0, %s52
      %s54 = sphi 0, %s52
      %s55 = sphi 0, %s54
      %s69 = sphi 0, %s55
      %s73 = sphi 0, %s73
      %s75 = sphi 0, %s73
      %s76 = sphi 0, %s75
      %s90 = sphi 0, %s76
      %s94 = sphi 0, %s94
      %s96 = sphi 0, %s94
      %s97 = sphi 0, %s96
      %s111 = sphi 0, %s97
      %s115 = sphi 0, %s115
      %s117 = sphi 0, %s115
      %s118 = sphi 0, %s117
      %s132 = sphi 0, %s118
      %s138 = sphi 0, %s140
      %s141 = sphi 0, %s138
      %s142 = sphi 0, %s141
      %s158 = sphi 0, %s142
    $region4: #{tpu_custom_call.1} parent=1 // loop_header_branch
      %21 = sbr.rel (%p19) target = $region8
    $region5: #{tpu_custom_call.1} parent=1 // loop_body
      %s23 = ssub.s32 %s18, 1
      %s24 = ssub.s32 %s18, 2
      %s25 = sadd.s32 %s18, 1
      %s26 = ssub.s32 %s18, %s25
      %p27 = scmp.eq.s32.totalorder %s26, 0
      %s29 = sadd.s32 %s28, 1
      %s30 = scalar_select %p27, %s28, %s29
      %p33 = pneg %p27
      %p34 = scmp.eq.s32.totalorder %s18, 1
      %p35 = por %p33, %p34
      %p36 = scmp.ne.s32.totalorder %s28, %s31
      %p37 = scmp.eq.s32.totalorder %s18, 0
      %p38 = por %p36, %p37
      %p39 = scmp.ne.s32.totalorder %s28, %s31
      %p40 = scmp.eq.s32.totalorder %s23, 1
      %p41 = por %p39, %p40
      %p42 = scmp.ne.s32.totalorder %s31, %s32
      %p43 = scmp.eq.s32.totalorder %s23, 0
      %p44 = por %p42, %p43
      %p45 = scmp.ne.s32.totalorder %s31, %s32
      %p46 = scmp.eq.s32.totalorder %s24, 1
      %p47 = por %p45, %p46
      %p49 = scmp.ne.s32.totalorder %s32, %s48
      %p50 = scmp.eq.s32.totalorder %s24, 0
      %p51 = por %p49, %p50
      %s53 = sadd.s32 %s52, 1
      %p56 = scmp.eq.s32.totalorder %s18, 1
      %p57 = scmp.ne.s32.totalorder %s52, %s54
      %p58 = scmp.eq.s32.totalorder %s18, 0
      %p59 = por %p57, %p58
      %p60 = scmp.ne.s32.totalorder %s52, %s54
      %p61 = scmp.eq.s32.totalorder %s23, 1
      %p62 = por %p60, %p61
      %p63 = scmp.ne.s32.totalorder %s54, %s55
      %p64 = scmp.eq.s32.totalorder %s23, 0
      %p65 = por %p63, %p64
      %p66 = scmp.ne.s32.totalorder %s54, %s55
      %p67 = scmp.eq.s32.totalorder %s24, 1
      %p68 = por %p66, %p67
      %p70 = scmp.ne.s32.totalorder %s55, %s69
      %p71 = scmp.eq.s32.totalorder %s24, 0
      %p72 = por %p70, %p71
      %s74 = sadd.s32 %s73, 1
      %p77 = scmp.eq.s32.totalorder %s18, 1
      %p78 = scmp.ne.s32.totalorder %s73, %s75
      %p79 = scmp.eq.s32.totalorder %s18, 0
      %p80 = por %p78, %p79
      %p81 = scmp.ne.s32.totalorder %s73, %s75
      %p82 = scmp.eq.s32.totalorder %s23, 1
      %p83 = por %p81, %p82
      %p84 = scmp.ne.s32.totalorder %s75, %s76
      %p85 = scmp.eq.s32.totalorder %s23, 0
      %p86 = por %p84, %p85
      %p87 = scmp.ne.s32.totalorder %s75, %s76
      %p88 = scmp.eq.s32.totalorder %s24, 1
      %p89 = por %p87, %p88
      %p91 = scmp.ne.s32.totalorder %s76, %s90
      %p92 = scmp.eq.s32.totalorder %s24, 0
      %p93 = por %p91, %p92
      %s95 = sadd.s32 %s94, 1
      %p98 = scmp.eq.s32.totalorder %s18, 1
      %p99 = scmp.ne.s32.totalorder %s94, %s96
      %p100 = scmp.eq.s32.totalorder %s18, 0
      %p101 = por %p99, %p100
      %p102 = scmp.ne.s32.totalorder %s94, %s96
      %p103 = scmp.eq.s32.totalorder %s23, 1
      %p104 = por %p102, %p103
      %p105 = scmp.ne.s32.totalorder %s96, %s97
      %p106 = scmp.eq.s32.totalorder %s23, 0
      %p107 = por %p105, %p106
      %p108 = scmp.ne.s32.totalorder %s96, %s97
      %p109 = scmp.eq.s32.totalorder %s24, 1
      %p110 = por %p108, %p109
      %p112 = scmp.ne.s32.totalorder %s97, %s111
      %p113 = scmp.eq.s32.totalorder %s24, 0
      %p114 = por %p112, %p113
      %s116 = sadd.s32 %s115, 1
      %p119 = scmp.eq.s32.totalorder %s18, 1
      %p120 = scmp.ne.s32.totalorder %s115, %s117
      %p121 = scmp.eq.s32.totalorder %s18, 0
      %p122 = por %p120, %p121
      %p123 = scmp.ne.s32.totalorder %s115, %s117
      %p124 = scmp.eq.s32.totalorder %s23, 1
      %p125 = por %p123, %p124
      %p126 = scmp.ne.s32.totalorder %s117, %s118
      %p127 = scmp.eq.s32.totalorder %s23, 0
      %p128 = por %p126, %p127
      %p129 = scmp.ne.s32.totalorder %s117, %s118
      %p130 = scmp.eq.s32.totalorder %s24, 1
      %p131 = por %p129, %p130
      %p133 = scmp.ne.s32.totalorder %s118, %s132
      %p134 = scmp.eq.s32.totalorder %s24, 0
      %p135 = por %p133, %p134
      %s136 = ssub.s32 %s18, %s25
      %p137 = scmp.eq.s32.totalorder %s136, 0
      %s139 = sadd.s32 %s138, 1
      %s140 = scalar_select %p137, %s138, %s139
      %p143 = pneg %p137
      %p144 = scmp.eq.s32.totalorder %s18, 1
      %p145 = por %p143, %p144
      %p146 = scmp.ne.s32.totalorder %s138, %s141
      %p147 = scmp.eq.s32.totalorder %s18, 0
      %p148 = por %p146, %p147
      %p149 = scmp.ne.s32.totalorder %s138, %s141
      %p150 = scmp.eq.s32.totalorder %s23, 1
      %p151 = por %p149, %p150
      %p152 = scmp.ne.s32.totalorder %s141, %s142
      %p153 = scmp.eq.s32.totalorder %s23, 0
      %p154 = por %p152, %p153
      %p155 = scmp.ne.s32.totalorder %s141, %s142
      %p156 = scmp.eq.s32.totalorder %s24, 1
      %p157 = por %p155, %p156
      %p159 = scmp.ne.s32.totalorder %s142, %s158
      %p160 = scmp.eq.s32.totalorder %s24, 0
      %p161 = por %p159, %p160
      %p162 = scmp.le.s32.totalorder 1, %s18
      %p163 = scmp.lt.s32.totalorder %s18, 3
      %p164 = pnand %p162, %p163
      %p165 = pneg %p164
      // Predicated region
      $region9: #{tpu_custom_call.1} parent=5 // pred_check
        _
      $region10: #{tpu_custom_call.1} parent=5 // pred_check_branch
        %167 = sbr.rel (%p164) target = $region12
      $region11: #{tpu_custom_call.1} parent=5 // pred_region
        %s168 = ssub.s32 %s18, 1
        // Predicated region
        $region13: #{tpu_custom_call.1} parent=11 // pred_check
          %p169 = pneg %p65
        $region14: #{tpu_custom_call.1} parent=11 // pred_check_branch
          %171 = sbr.rel (%p169) target = $region16
        $region15: #{tpu_custom_call.1} parent=11 // pred_region
          %s173 = ssub.s32 4096, 4096
          %174 = vsyncadd [#allocation6], %s173
          %s175 = sshll.u32 [#allocation5], 4
          %s176 = int_to_ptr.vmem [resolvable:$true] %s175
          %181 = dma.hbm_to_vmem [thread:$0]  %s1, 4096, %s176, [#allocation6], 256, 256, 16
        $region16: #{tpu_custom_call.1} parent=11 // pred_fallthru
          _
        // Predicated region
        $region17: #{tpu_custom_call.1} parent=11 // pred_check
          %p182 = pneg %p86
        $region18: #{tpu_custom_call.1} parent=11 // pred_check_branch
          %184 = sbr.rel (%p182) target = $region20
        $region19: #{tpu_custom_call.1} parent=11 // pred_region
          _
        $region20: #{tpu_custom_call.1} parent=11 // pred_fallthru
          _
        // Predicated region
        $region21: #{tpu_custom_call.1} parent=11 // pred_check
          %p185 = pneg %p107
        $region22: #{tpu_custom_call.1} parent=11 // pred_check_branch
          %187 = sbr.rel (%p185) target = $region24
        $region23: #{tpu_custom_call.1} parent=11 // pred_region
          %s189 = ssub.s32 4096, 4096
          %190 = vsyncadd [#allocation6], %s189
          %s191 = sshll.u32 [#allocation7], 4
          %s192 = int_to_ptr.vmem [resolvable:$true] %s191
          %197 = dma.hbm_to_vmem [thread:$0]  %s3, 4096, %s192, [#allocation6], 64, 64, 4
        $region24: #{tpu_custom_call.1} parent=11 // pred_fallthru
          _
        // Predicated region
        $region25: #{tpu_custom_call.1} parent=11 // pred_check
          %p198 = pneg %p128
        $region26: #{tpu_custom_call.1} parent=11 // pred_check_branch
          %200 = sbr.rel (%p198) target = $region28
        $region27: #{tpu_custom_call.1} parent=11 // pred_region
          _
        $region28: #{tpu_custom_call.1} parent=11 // pred_fallthru
          _
      $region12: #{tpu_custom_call.1} parent=5 // pred_fallthru
        _
      %p201 = scmp.lt.s32.totalorder %s18, 2
      // Predicated region
      $region29: #{tpu_custom_call.1} parent=5 // pred_check
        %p202 = pneg %p201
      $region30: #{tpu_custom_call.1} parent=5 // pred_check_branch
        %204 = sbr.rel (%p202) target = $region32
      $region31: #{tpu_custom_call.1} parent=5 // pred_region
        // Predicated region
        $region33: #{tpu_custom_call.1} parent=31 // pred_check
          %p205 = pneg %p38
        $region34: #{tpu_custom_call.1} parent=31 // pred_check_branch
          %207 = sbr.rel (%p205) target = $region36
        $region35: #{tpu_custom_call.1} parent=31 // pred_region
          %s208 = sand.u32 %s28, 1
          %s209 = scalar_lea.sflag [#allocation3], %s208
          %s210 = sand.u32 %s28, 1
          %s211 = smul.addr %s210, 8
          %s212 = scalar_lea.vmem [#allocation2], %s211
          %s214 = ssub.s32 128, 128
          %215 = vsyncadd %s209, %s214
          %s216 = smul.addr %s18, 128
          %s217 = scalar_lea.hbm %s0, %s216
          %s219 = sshll.u32 %s212, 4
          %s220 = int_to_ptr.vmem [resolvable:$true] %s219
          %222 = dma.hbm_to_vmem [thread:$0]  %s217, 128, %s220, %s209
        $region36: #{tpu_custom_call.1} parent=31 // pred_fallthru
          _
      $region32: #{tpu_custom_call.1} parent=5 // pred_fallthru
        _
      %p223 = scmp.le.s32.totalorder 1, %s18
      %p224 = scmp.lt.s32.totalorder %s18, 3
      %p225 = pnand %p223, %p224
      %p226 = pneg %p225
      // Predicated region
      $region37: #{tpu_custom_call.1} parent=5 // pred_check
        _
      $region38: #{tpu_custom_call.1} parent=5 // pred_check_branch
        %228 = sbr.rel (%p225) target = $region40
      $region39: #{tpu_custom_call.1} parent=5 // pred_region
        %s229 = ssub.s32 %s18, 1
        %s230 = sand.u32 %s31, 1
        %s231 = scalar_lea.sflag [#allocation3], %s230
        %s232 = sand.u32 %s31, 1
        %s233 = smul.addr %s232, 8
        %s234 = scalar_lea.vmem [#allocation2], %s233
        // Predicated region
        $region41: #{tpu_custom_call.1} parent=39 // pred_check
          %p235 = pneg %p44
        $region42: #{tpu_custom_call.1} parent=39 // pred_check_branch
          %237 = sbr.rel (%p235) target = $region44
        $region43: #{tpu_custom_call.1} parent=39 // pred_region
          %238 = dma.done %s231, 128
        $region44: #{tpu_custom_call.1} parent=39 // pred_fallthru
          _
        // Predicated region
        $region45: #{tpu_custom_call.1} parent=39 // pred_check
          %p239 = pneg %p65
        $region46: #{tpu_custom_call.1} parent=39 // pred_check_branch
          %241 = sbr.rel (%p239) target = $region48
        $region47: #{tpu_custom_call.1} parent=39 // pred_region
          %242 = dma.done [#allocation6], 4096
        $region48: #{tpu_custom_call.1} parent=39 // pred_fallthru
          _
        // Predicated region
        $region49: #{tpu_custom_call.1} parent=39 // pred_check
          %p243 = pneg %p107
        $region50: #{tpu_custom_call.1} parent=39 // pred_check_branch
          %245 = sbr.rel (%p243) target = $region52
        $region51: #{tpu_custom_call.1} parent=39 // pred_region
          %246 = dma.done [#allocation6], 4096
        $region52: #{tpu_custom_call.1} parent=39 // pred_fallthru
          _
        %s247 = sand.u32 %s31, 1
        %s248 = scalar_lea.sflag [#allocation3], %s247
        %s249 = sand.u32 %s31, 1
        %s250 = smul.addr %s249, 8
        %s251 = scalar_lea.vmem [#allocation2], %s250
        %p252 = pneg %p44
        %p253 = pneg %p41
        %p254 = pneg %p65
        %p255 = pneg %p62
        %p256 = pneg %p86
        %p257 = pneg %p83
        %p258 = pneg %p107
        %p259 = pneg %p104
        %p260 = pneg %p128
        %p261 = pneg %p125
        %p262 = pneg %p154
        %p263 = pneg %p151
        %s264 = sand.u32 %s141, 1
        %s265 = scalar_lea.sflag [#allocation4], %s264
        %s266 = sand.u32 %s141, 1
        %s267 = smul.addr %s266, 8
        %s268 = scalar_lea.vmem [#allocation8], %s267
        %v270 = vld [vmem:[%s234] sm:$0xff]
        %271 = vadd.xlane.f32.xlu0 %v270
        %v272 = vpop.xlane.xlu0 %271
        %v273 = vrcp.pop 128.0
        %v274 = vmul.f32 %v272, %v273
        %v275 = vsub.f32 %v270, %v274
        %v276 = vmul.f32 %v275, %v275
        %277 = vadd.xlane.f32.xlu0 %v276
        %v278 = vpop.xlane.xlu0 %277
        %v279 = vmul.f32 %v278, %v273
        %v280 = vadd.f32 %v279, 1e-05
        %v281 = vrsqrt.pop %v280
        %v282 = vmul.f32 %v275, %v281
        %v283 = vpack.c.bf16 %v282, %v282
        %v284 = vld [vmem:[#allocation5] sm:$0xff]
        %v285 = vld [vmem:[#allocation5 + $0x8] sm:$0xff]
        %v286 = vld [vmem:[#allocation5 + $0x10] sm:$0xff]
        %v287 = vld [vmem:[#allocation5 + $0x18] sm:$0xff]
        %v288 = vld [vmem:[#allocation5 + $0x20] sm:$0xff]
        %v289 = vld [vmem:[#allocation5 + $0x28] sm:$0xff]
        %v290 = vld [vmem:[#allocation5 + $0x30] sm:$0xff]
        %v291 = vld [vmem:[#allocation5 + $0x38] sm:$0xff]
        %v292 = vld [vmem:[#allocation5 + $0x40] sm:$0xff]
        %v293 = vld [vmem:[#allocation5 + $0x48] sm:$0xff]
        %v294 = vld [vmem:[#allocation5 + $0x50] sm:$0xff]
        %v295 = vld [vmem:[#allocation5 + $0x58] sm:$0xff]
        %v296 = vld [vmem:[#allocation5 + $0x60] sm:$0xff]
        %v297 = vld [vmem:[#allocation5 + $0x68] sm:$0xff]
        %v298 = vld [vmem:[#allocation5 + $0x70] sm:$0xff]
        %v299 = vld [vmem:[#allocation5 + $0x78] sm:$0xff]
        %v300 = vld [vmem:[#allocation5 + $0x80] sm:$0xff]
        %v301 = vld [vmem:[#allocation5 + $0x88] sm:$0xff]
        %v302 = vld [vmem:[#allocation5 + $0x90] sm:$0xff]
        %v303 = vld [vmem:[#allocation5 + $0x98] sm:$0xff]
        %v304 = vld [vmem:[#allocation5 + $0xa0] sm:$0xff]
        %v305 = vld [vmem:[#allocation5 + $0xa8] sm:$0xff]
        %v306 = vld [vmem:[#allocation5 + $0xb0] sm:$0xff]
        %v307 = vld [vmem:[#allocation5 + $0xb8] sm:$0xff]
        %v308 = vld [vmem:[#allocation5 + $0xc0] sm:$0xff]
        %v309 = vld [vmem:[#allocation5 + $0xc8] sm:$0xff]
        %v310 = vld [vmem:[#allocation5 + $0xd0] sm:$0xff]
        %v311 = vld [vmem:[#allocation5 + $0xd8] sm:$0xff]
        %v312 = vld [vmem:[#allocation5 + $0xe0] sm:$0xff]
        %v313 = vld [vmem:[#allocation5 + $0xe8] sm:$0xff]
        %v314 = vld [vmem:[#allocation5 + $0xf0] sm:$0xff]
        %v315 = vld [vmem:[#allocation5 + $0xf8] sm:$0xff]
        %v316 = vld [vmem:[%s2] sm:$0xf]
        %v318 = vlaneseq
        %v319 = vshrl.u32 %v318, 7
        %v320 = vsub.s32 0, %v319
        %v321 = vrot.slane %v316, %v320
        %v322 = vlaneseq
        %v323 = vshrl.u32 %v322, 7
        %v324 = vsub.s32 1, %v323
        %v325 = vrot.slane %v316, %v324
        %v326 = vlaneseq
        %v327 = vshrl.u32 %v326, 7
        %v328 = vsub.s32 2, %v327
        %v329 = vrot.slane %v316, %v328
        %v330 = vlaneseq
        %v331 = vshrl.u32 %v330, 7
        %v332 = vsub.s32 3, %v331
        %v333 = vrot.slane %v316, %v332
        %v370 = vunpack.c.l.b16 %v284
        %v371 = vunpack.c.h.b16 %v284
        %v372 = vunpack.c.l.b16 %v285
        %v373 = vunpack.c.h.b16 %v285
        %v374 = vunpack.c.l.b16 %v286
        %v375 = vunpack.c.h.b16 %v286
        %v376 = vunpack.c.l.b16 %v287
        %v377 = vunpack.c.h.b16 %v287
        %v378 = vunpack.c.l.b16 %v288
        %v379 = vunpack.c.h.b16 %v288
        %v380 = vunpack.c.l.b16 %v289
        %v381 = vunpack.c.h.b16 %v289
        %v382 = vunpack.c.l.b16 %v290
        %v383 = vunpack.c.h.b16 %v290
        %v384 = vunpack.c.l.b16 %v291
        %v385 = vunpack.c.h.b16 %v291
        %v386 = vunpack.c.l.b16 %v292
        %v387 = vunpack.c.h.b16 %v292
        %v388 = vunpack.c.l.b16 %v293
        %v389 = vunpack.c.h.b16 %v293
        %v390 = vunpack.c.l.b16 %v294
        %v391 = vunpack.c.h.b16 %v294
        %v392 = vunpack.c.l.b16 %v295
        %v393 = vunpack.c.h.b16 %v295
        %v394 = vunpack.c.l.b16 %v296
        %v395 = vunpack.c.h.b16 %v296
        %v396 = vunpack.c.l.b16 %v297
        %v397 = vunpack.c.h.b16 %v297
        %v398 = vunpack.c.l.b16 %v298
        %v399 = vunpack.c.h.b16 %v298
        %v400 = vunpack.c.l.b16 %v299
        %v401 = vunpack.c.h.b16 %v299
        %v402 = vunpack.c.l.b16 %v300
        %v403 = vunpack.c.h.b16 %v300
        %v404 = vunpack.c.l.b16 %v301
        %v405 = vunpack.c.h.b16 %v301
        %v406 = vunpack.c.l.b16 %v302
        %v407 = vunpack.c.h.b16 %v302
        %v408 = vunpack.c.l.b16 %v303
        %v409 = vunpack.c.h.b16 %v303
        %v410 = vunpack.c.l.b16 %v304
        %v411 = vunpack.c.h.b16 %v304
        %v412 = vunpack.c.l.b16 %v305
        %v413 = vunpack.c.h.b16 %v305
        %v414 = vunpack.c.l.b16 %v306
        %v415 = vunpack.c.h.b16 %v306
        %v416 = vunpack.c.l.b16 %v307
        %v417 = vunpack.c.h.b16 %v307
        %v418 = vunpack.c.l.b16 %v308
        %v419 = vunpack.c.h.b16 %v308
        %v420 = vunpack.c.l.b16 %v309
        %v421 = vunpack.c.h.b16 %v309
        %v422 = vunpack.c.l.b16 %v310
        %v423 = vunpack.c.h.b16 %v310
        %v424 = vunpack.c.l.b16 %v311
        %v425 = vunpack.c.h.b16 %v311
        %v426 = vunpack.c.l.b16 %v312
        %v427 = vunpack.c.h.b16 %v312
        %v428 = vunpack.c.l.b16 %v313
        %v429 = vunpack.c.h.b16 %v313
        %v430 = vunpack.c.l.b16 %v314
        %v431 = vunpack.c.h.b16 %v314
        %v432 = vunpack.c.l.b16 %v315
        %v433 = vunpack.c.h.b16 %v315
        %v434 = vpack.c.b16 %v374, %v370
        %v435 = vpack.c.b16 %v375, %v371
        %v436 = vpack.c.b16 %v376, %v372
        %v437 = vpack.c.b16 %v377, %v373
        %v438 = vpack.c.b16 %v382, %v378
        %v439 = vpack.c.b16 %v383, %v379
        %v440 = vpack.c.b16 %v384, %v380
        %v441 = vpack.c.b16 %v385, %v381
        %v442 = vpack.c.b16 %v390, %v386
        %v443 = vpack.c.b16 %v391, %v387
        %v444 = vpack.c.b16 %v392, %v388
        %v445 = vpack.c.b16 %v393, %v389
        %v446 = vpack.c.b16 %v398, %v394
        %v447 = vpack.c.b16 %v399, %v395
        %v448 = vpack.c.b16 %v400, %v396
        %v449 = vpack.c.b16 %v401, %v397
        %v450 = vpack.c.b16 %v406, %v402
        %v451 = vpack.c.b16 %v407, %v403
        %v452 = vpack.c.b16 %v408, %v404
        %v453 = vpack.c.b16 %v409, %v405
        %v454 = vpack.c.b16 %v414, %v410
        %v455 = vpack.c.b16 %v415, %v411
        %v456 = vpack.c.b16 %v416, %v412
        %v457 = vpack.c.b16 %v417, %v413
        %v458 = vpack.c.b16 %v422, %v418
        %v459 = vpack.c.b16 %v423, %v419
        %v460 = vpack.c.b16 %v424, %v420
        %v461 = vpack.c.b16 %v425, %v421
        %v462 = vpack.c.b16 %v430, %v426
        %v463 = vpack.c.b16 %v431, %v427
        %v464 = vpack.c.b16 %v432, %v428
        %v465 = vpack.c.b16 %v433, %v429
        %498 = vmatprep.subr.bf16.mxu0 %v435
        %499 = vmatpush1.bf16.msra.mxu0 %v434
        %500 = vmatprep.subr.bf16.mxu0 %v439
        %501 = vmatpush1.bf16.msra.mxu0 %v438
        %502 = vmatprep.subr.bf16.mxu0 %v443
        %503 = vmatpush1.bf16.msra.mxu0 %v442
        %504 = vmatprep.subr.bf16.mxu0 %v447
        %505 = vmatpush1.bf16.msra.mxu0 %v446
        %506 = vmatprep.subr.bf16.mxu0 %v451
        %507 = vmatpush1.bf16.msra.mxu0 %v450
        %508 = vmatprep.subr.bf16.mxu0 %v455
        %509 = vmatpush1.bf16.msra.mxu0 %v454
        %510 = vmatprep.subr.bf16.mxu0 %v459
        %511 = vmatpush1.bf16.msra.mxu0 %v458
        %512 = vmatprep.subr.bf16.mxu0 %v463
        %513 = vmatpush1.bf16.msra.mxu0 %v462
        %514 = vmatprep.subr.bf16.mxu0 0
        %515 = vmatpush1.bf16.msra.mxu0 0
        %516 = vmatprep.subr.bf16.mxu0 0
        %517 = vmatpush1.bf16.msra.mxu0 0
        %518 = vmatprep.subr.bf16.mxu0 0
        %519 = vmatpush1.bf16.msra.mxu0 0
        %520 = vmatprep.subr.bf16.mxu0 0
        %521 = vmatpush1.bf16.msra.mxu0 0
        %522 = vmatprep.subr.bf16.mxu0 0
        %523 = vmatpush1.bf16.msra.mxu0 0
        %524 = vmatprep.subr.bf16.mxu0 0
        %525 = vmatpush1.bf16.msra.mxu0 0
        %526 = vmatprep.subr.bf16.mxu0 0
        %527 = vmatpush1.bf16.msra.mxu0 0
        %528 = vmatprep.subr.bf16.mxu0 0
        %529 = vmatpush1.bf16.msra.mxu0 0
        %530 = vmatprep.mubr.bf16.mxu0 0
        %531 = vmatmul.mubr.bf16.gmra.mrb[0].mxu0 %v283
        %v532 = vpop.f32.mrb[0].mxu0
        %v533 = vadd.f32 %v321, %v532
        %v534 = vpop.f32.mrb[0].mxu0
        %v535 = vadd.f32 %v325, %v534
        %v536 = vpop.f32.mrb[0].mxu0
        %v537 = vpop.f32.mrb[0].mxu0
        %538 = vdwg.mxu0
        %539 = vmatprep.subr.bf16.mxu0 %v437
        %540 = vmatpush1.bf16.msra.mxu0 %v436
        %541 = vmatprep.subr.bf16.mxu0 %v441
        %542 = vmatpush1.bf16.msra.mxu0 %v440
        %543 = vmatprep.subr.bf16.mxu0 %v445
        %544 = vmatpush1.bf16.msra.mxu0 %v444
        %545 = vmatprep.subr.bf16.mxu0 %v449
        %546 = vmatpush1.bf16.msra.mxu0 %v448
        %547 = vmatprep.subr.bf16.mxu0 %v453
        %548 = vmatpush1.bf16.msra.mxu0 %v452
        %549 = vmatprep.subr.bf16.mxu0 %v457
        %550 = vmatpush1.bf16.msra.mxu0 %v456
        %551 = vmatprep.subr.bf16.mxu0 %v461
        %552 = vmatpush1.bf16.msra.mxu0 %v460
        %553 = vmatprep.subr.bf16.mxu0 %v465
        %554 = vmatpush1.bf16.msra.mxu0 %v464
        %555 = vmatprep.subr.bf16.mxu0 0
        %556 = vmatpush1.bf16.msra.mxu0 0
        %557 = vmatprep.subr.bf16.mxu0 0
        %558 = vmatpush1.bf16.msra.mxu0 0
        %559 = vmatprep.subr.bf16.mxu0 0
        %560 = vmatpush1.bf16.msra.mxu0 0
        %561 = vmatprep.subr.bf16.mxu0 0
        %562 = vmatpush1.bf16.msra.mxu0 0
        %563 = vmatprep.subr.bf16.mxu0 0
        %564 = vmatpush1.bf16.msra.mxu0 0
        %565 = vmatprep.subr.bf16.mxu0 0
        %566 = vmatpush1.bf16.msra.mxu0 0
        %567 = vmatprep.subr.bf16.mxu0 0
        %568 = vmatpush1.bf16.msra.mxu0 0
        %569 = vmatprep.subr.bf16.mxu0 0
        %570 = vmatpush1.bf16.msra.mxu0 0
        %571 = vmatprep.mubr.bf16.mxu0 0
        %572 = vmatmul.mubr.bf16.gmra.mrb[0].mxu0 %v283
        %v573 = vpop.f32.mrb[0].mxu0
        %v574 = vadd.f32 %v329, %v573
        %v575 = vpop.f32.mrb[0].mxu0
        %v576 = vadd.f32 %v333, %v575
        %v577 = vpop.f32.mrb[0].mxu0
        %v578 = vpop.f32.mrb[0].mxu0
        %579 = vdwg.mxu0
        %v580 = vmax.f32 %v533, 0.0
        %v581 = vmax.f32 %v535, 0.0
        %v582 = vmax.f32 %v574, 0.0
        %v583 = vmax.f32 %v576, 0.0
        %v584 = vadd.f32 %v580, %v581
        %v585 = vadd.f32 %v584, %v582
        %v586 = vadd.f32 %v585, %v583
        %587 = vadd.xlane.f32.xlu0 %v586
        %v588 = vpop.xlane.xlu0 %587
        %v589 = vrcp.pop 512.0
        %v590 = vmul.f32 %v588, %v589
        %v591 = vsub.f32 %v580, %v590
        %v592 = vsub.f32 %v581, %v590
        %v593 = vsub.f32 %v582, %v590
        %v594 = vsub.f32 %v583, %v590
        %v595 = vmul.f32 %v591, %v591
        %v596 = vmul.f32 %v592, %v592
        %v597 = vmul.f32 %v593, %v593
        %v598 = vmul.f32 %v594, %v594
        %v599 = vadd.f32 %v595, %v596
        %v600 = vadd.f32 %v599, %v597
        %v601 = vadd.f32 %v600, %v598
        %602 = vadd.xlane.f32.xlu0 %v601
        %v603 = vpop.xlane.xlu0 %602
        %v604 = vmul.f32 %v603, %v589
        %v605 = vadd.f32 %v604, 1e-05
        %v606 = vrsqrt.pop %v605
        %v607 = vmul.f32 %v591, %v606
        %v608 = vmul.f32 %v592, %v606
        %v609 = vmul.f32 %v593, %v606
        %v610 = vmul.f32 %v594, %v606
        %v611 = vpack.c.bf16 %v607, %v607
        %v612 = vpack.c.bf16 %v608, %v608
        %v613 = vpack.c.bf16 %v609, %v609
        %v614 = vpack.c.bf16 %v610, %v610
        %v615 = vld [vmem:[#allocation7] sm:$0xf]
        %v616 = vld [vmem:[#allocation7 + $0x4] sm:$0xf]
        %v617 = vld [vmem:[#allocation7 + $0x8] sm:$0xf]
        %v618 = vld [vmem:[#allocation7 + $0xc] sm:$0xf]
        %v619 = vld [vmem:[#allocation7 + $0x10] sm:$0xf]
        %v620 = vld [vmem:[#allocation7 + $0x14] sm:$0xf]
        %v621 = vld [vmem:[#allocation7 + $0x18] sm:$0xf]
        %v622 = vld [vmem:[#allocation7 + $0x1c] sm:$0xf]
        %v623 = vld [vmem:[#allocation7 + $0x20] sm:$0xf]
        %v624 = vld [vmem:[#allocation7 + $0x24] sm:$0xf]
        %v625 = vld [vmem:[#allocation7 + $0x28] sm:$0xf]
        %v626 = vld [vmem:[#allocation7 + $0x2c] sm:$0xf]
        %v627 = vld [vmem:[#allocation7 + $0x30] sm:$0xf]
        %v628 = vld [vmem:[#allocation7 + $0x34] sm:$0xf]
        %v629 = vld [vmem:[#allocation7 + $0x38] sm:$0xf]
        %v630 = vld [vmem:[#allocation7 + $0x3c] sm:$0xf]
        %v631 = vld [vmem:[#allocation7 + $0x40] sm:$0xf]
        %v632 = vld [vmem:[#allocation7 + $0x44] sm:$0xf]
        %v633 = vld [vmem:[#allocation7 + $0x48] sm:$0xf]
        %v634 = vld [vmem:[#allocation7 + $0x4c] sm:$0xf]
        %v635 = vld [vmem:[#allocation7 + $0x50] sm:$0xf]
        %v636 = vld [vmem:[#allocation7 + $0x54] sm:$0xf]
        %v637 = vld [vmem:[#allocation7 + $0x58] sm:$0xf]
        %v638 = vld [vmem:[#allocation7 + $0x5c] sm:$0xf]
        %v639 = vld [vmem:[#allocation7 + $0x60] sm:$0xf]
        %v640 = vld [vmem:[#allocation7 + $0x64] sm:$0xf]
        %v641 = vld [vmem:[#allocation7 + $0x68] sm:$0xf]
        %v642 = vld [vmem:[#allocation7 + $0x6c] sm:$0xf]
        %v643 = vld [vmem:[#allocation7 + $0x70] sm:$0xf]
        %v644 = vld [vmem:[#allocation7 + $0x74] sm:$0xf]
        %v645 = vld [vmem:[#allocation7 + $0x78] sm:$0xf]
        %v646 = vld [vmem:[#allocation7 + $0x7c] sm:$0xf]
        %v647 = vld [vmem:[#allocation7 + $0x80] sm:$0xf]
        %v648 = vld [vmem:[#allocation7 + $0x84] sm:$0xf]
        %v649 = vld [vmem:[#allocation7 + $0x88] sm:$0xf]
        %v650 = vld [vmem:[#allocation7 + $0x8c] sm:$0xf]
        %v651 = vld [vmem:[#allocation7 + $0x90] sm:$0xf]
        %v652 = vld [vmem:[#allocation7 + $0x94] sm:$0xf]
        %v653 = vld [vmem:[#allocation7 + $0x98] sm:$0xf]
        %v654 = vld [vmem:[#allocation7 + $0x9c] sm:$0xf]
        %v655 = vld [vmem:[#allocation7 + $0xa0] sm:$0xf]
        %v656 = vld [vmem:[#allocation7 + $0xa4] sm:$0xf]
        %v657 = vld [vmem:[#allocation7 + $0xa8] sm:$0xf]
        %v658 = vld [vmem:[#allocation7 + $0xac] sm:$0xf]
        %v659 = vld [vmem:[#allocation7 + $0xb0] sm:$0xf]
        %v660 = vld [vmem:[#allocation7 + $0xb4] sm:$0xf]
        %v661 = vld [vmem:[#allocation7 + $0xb8] sm:$0xf]
        %v662 = vld [vmem:[#allocation7 + $0xbc] sm:$0xf]
        %v663 = vld [vmem:[#allocation7 + $0xc0] sm:$0xf]
        %v664 = vld [vmem:[#allocation7 + $0xc4] sm:$0xf]
        %v665 = vld [vmem:[#allocation7 + $0xc8] sm:$0xf]
        %v666 = vld [vmem:[#allocation7 + $0xcc] sm:$0xf]
        %v667 = vld [vmem:[#allocation7 + $0xd0] sm:$0xf]
        %v668 = vld [vmem:[#allocation7 + $0xd4] sm:$0xf]
        %v669 = vld [vmem:[#allocation7 + $0xd8] sm:$0xf]
        %v670 = vld [vmem:[#allocation7 + $0xdc] sm:$0xf]
        %v671 = vld [vmem:[#allocation7 + $0xe0] sm:$0xf]
        %v672 = vld [vmem:[#allocation7 + $0xe4] sm:$0xf]
        %v673 = vld [vmem:[#allocation7 + $0xe8] sm:$0xf]
        %v674 = vld [vmem:[#allocation7 + $0xec] sm:$0xf]
        %v675 = vld [vmem:[#allocation7 + $0xf0] sm:$0xf]
        %v676 = vld [vmem:[#allocation7 + $0xf4] sm:$0xf]
        %v677 = vld [vmem:[#allocation7 + $0xf8] sm:$0xf]
        %v678 = vld [vmem:[#allocation7 + $0xfc] sm:$0xf]
        %v679 = vld [vmem:[%s4] sm:$0x1]
        %v681 = vlaneseq
        %v682 = vshrl.u32 %v681, 7
        %v683 = vsub.s32 0, %v682
        %v684 = vrot.slane %v679, %v683
        %v750 = vunpack.c.l.b16 %v615
        %v751 = vunpack.c.l.b16 %v616
        %v752 = vunpack.c.l.b16 %v617
        %v753 = vunpack.c.l.b16 %v618
        %v754 = vunpack.c.l.b16 %v619
        %v755 = vunpack.c.l.b16 %v620
        %v756 = vunpack.c.l.b16 %v621
        %v757 = vunpack.c.l.b16 %v622
        %v758 = vunpack.c.l.b16 %v623
        %v759 = vunpack.c.l.b16 %v624
        %v760 = vunpack.c.l.b16 %v625
        %v761 = vunpack.c.l.b16 %v626
        %v762 = vunpack.c.l.b16 %v627
        %v763 = vunpack.c.l.b16 %v628
        %v764 = vunpack.c.l.b16 %v629
        %v765 = vunpack.c.l.b16 %v630
        %v766 = vunpack.c.l.b16 %v631
        %v767 = vunpack.c.l.b16 %v632
        %v768 = vunpack.c.l.b16 %v633
        %v769 = vunpack.c.l.b16 %v634
        %v770 = vunpack.c.l.b16 %v635
        %v771 = vunpack.c.l.b16 %v636
        %v772 = vunpack.c.l.b16 %v637
        %v773 = vunpack.c.l.b16 %v638
        %v774 = vunpack.c.l.b16 %v639
        %v775 = vunpack.c.l.b16 %v640
        %v776 = vunpack.c.l.b16 %v641
        %v777 = vunpack.c.l.b16 %v642
        %v778 = vunpack.c.l.b16 %v643
        %v779 = vunpack.c.l.b16 %v644
        %v780 = vunpack.c.l.b16 %v645
        %v781 = vunpack.c.l.b16 %v646
        %v782 = vunpack.c.l.b16 %v647
        %v783 = vunpack.c.l.b16 %v648
        %v784 = vunpack.c.l.b16 %v649
        %v785 = vunpack.c.l.b16 %v650
        %v786 = vunpack.c.l.b16 %v651
        %v787 = vunpack.c.l.b16 %v652
        %v788 = vunpack.c.l.b16 %v653
        %v789 = vunpack.c.l.b16 %v654
        %v790 = vunpack.c.l.b16 %v655
        %v791 = vunpack.c.l.b16 %v656
        %v792 = vunpack.c.l.b16 %v657
        %v793 = vunpack.c.l.b16 %v658
        %v794 = vunpack.c.l.b16 %v659
        %v795 = vunpack.c.l.b16 %v660
        %v796 = vunpack.c.l.b16 %v661
        %v797 = vunpack.c.l.b16 %v662
        %v798 = vunpack.c.l.b16 %v663
        %v799 = vunpack.c.l.b16 %v664
        %v800 = vunpack.c.l.b16 %v665
        %v801 = vunpack.c.l.b16 %v666
        %v802 = vunpack.c.l.b16 %v667
        %v803 = vunpack.c.l.b16 %v668
        %v804 = vunpack.c.l.b16 %v669
        %v805 = vunpack.c.l.b16 %v670
        %v806 = vunpack.c.l.b16 %v671
        %v807 = vunpack.c.l.b16 %v672
        %v808 = vunpack.c.l.b16 %v673
        %v809 = vunpack.c.l.b16 %v674
        %v810 = vunpack.c.l.b16 %v675
        %v811 = vunpack.c.l.b16 %v676
        %v812 = vunpack.c.l.b16 %v677
        %v813 = vunpack.c.l.b16 %v678
        %v814 = vpack.c.b16 %v751, %v750
        %v815 = vpack.c.b16 %v753, %v752
        %v816 = vpack.c.b16 %v755, %v754
        %v817 = vpack.c.b16 %v757, %v756
        %v818 = vpack.c.b16 %v759, %v758
        %v819 = vpack.c.b16 %v761, %v760
        %v820 = vpack.c.b16 %v763, %v762
        %v821 = vpack.c.b16 %v765, %v764
        %v822 = vpack.c.b16 %v767, %v766
        %v823 = vpack.c.b16 %v769, %v768
        %v824 = vpack.c.b16 %v771, %v770
        %v825 = vpack.c.b16 %v773, %v772
        %v826 = vpack.c.b16 %v775, %v774
        %v827 = vpack.c.b16 %v777, %v776
        %v828 = vpack.c.b16 %v779, %v778
        %v829 = vpack.c.b16 %v781, %v780
        %v830 = vpack.c.b16 %v783, %v782
        %v831 = vpack.c.b16 %v785, %v784
        %v832 = vpack.c.b16 %v787, %v786
        %v833 = vpack.c.b16 %v789, %v788
        %v834 = vpack.c.b16 %v791, %v790
        %v835 = vpack.c.b16 %v793, %v792
        %v836 = vpack.c.b16 %v795, %v794
        %v837 = vpack.c.b16 %v797, %v796
        %v838 = vpack.c.b16 %v799, %v798
        %v839 = vpack.c.b16 %v801, %v800
        %v840 = vpack.c.b16 %v803, %v802
        %v841 = vpack.c.b16 %v805, %v804
        %v842 = vpack.c.b16 %v807, %v806
        %v843 = vpack.c.b16 %v809, %v808
        %v844 = vpack.c.b16 %v811, %v810
        %v845 = vpack.c.b16 %v813, %v812
        %878 = vmatprep.subr.bf16.mxu0 0
        %879 = vmatpush1.bf16.msra.mxu0 %v814
        %880 = vmatprep.subr.bf16.mxu0 0
        %881 = vmatpush1.bf16.msra.mxu0 %v815
        %882 = vmatprep.subr.bf16.mxu0 0
        %883 = vmatpush1.bf16.msra.mxu0 %v816
        %884 = vmatprep.subr.bf16.mxu0 0
        %885 = vmatpush1.bf16.msra.mxu0 %v817
        %886 = vmatprep.subr.bf16.mxu0 0
        %887 = vmatpush1.bf16.msra.mxu0 %v818
        %888 = vmatprep.subr.bf16.mxu0 0
        %889 = vmatpush1.bf16.msra.mxu0 %v819
        %890 = vmatprep.subr.bf16.mxu0 0
        %891 = vmatpush1.bf16.msra.mxu0 %v820
        %892 = vmatprep.subr.bf16.mxu0 0
        %893 = vmatpush1.bf16.msra.mxu0 %v821
        %894 = vmatprep.subr.bf16.mxu0 0
        %895 = vmatpush1.bf16.msra.mxu0 %v822
        %896 = vmatprep.subr.bf16.mxu0 0
        %897 = vmatpush1.bf16.msra.mxu0 %v823
        %898 = vmatprep.subr.bf16.mxu0 0
        %899 = vmatpush1.bf16.msra.mxu0 %v824
        %900 = vmatprep.subr.bf16.mxu0 0
        %901 = vmatpush1.bf16.msra.mxu0 %v825
        %902 = vmatprep.subr.bf16.mxu0 0
        %903 = vmatpush1.bf16.msra.mxu0 %v826
        %904 = vmatprep.subr.bf16.mxu0 0
        %905 = vmatpush1.bf16.msra.mxu0 %v827
        %906 = vmatprep.subr.bf16.mxu0 0
        %907 = vmatpush1.bf16.msra.mxu0 %v828
        %908 = vmatprep.subr.bf16.mxu0 0
        %909 = vmatpush1.bf16.msra.mxu0 %v829
        %910 = vmatprep.mubr.bf16.mxu0 %v612
        %911 = vmatmul.mubr.bf16.gmra.mrb[0].mxu0 %v611
        %v912 = vpop.f32.mrb[0].mxu0
        %v913 = vadd.f32 %v684, %v912
        %v914 = vpop.f32.mrb[0].mxu0
        %v915 = vpop.f32.mrb[0].mxu0
        %v916 = vpop.f32.mrb[0].mxu0
        %917 = vdwg.mxu0
        %918 = vmatprep.subr.bf16.mxu0 0
        %919 = vmatpush1.bf16.msra.mxu0 %v830
        %920 = vmatprep.subr.bf16.mxu0 0
        %921 = vmatpush1.bf16.msra.mxu0 %v831
        %922 = vmatprep.subr.bf16.mxu0 0
        %923 = vmatpush1.bf16.msra.mxu0 %v832
        %924 = vmatprep.subr.bf16.mxu0 0
        %925 = vmatpush1.bf16.msra.mxu0 %v833
        %926 = vmatprep.subr.bf16.mxu0 0
        %927 = vmatpush1.bf16.msra.mxu0 %v834
        %928 = vmatprep.subr.bf16.mxu0 0
        %929 = vmatpush1.bf16.msra.mxu0 %v835
        %930 = vmatprep.subr.bf16.mxu0 0
        %931 = vmatpush1.bf16.msra.mxu0 %v836
        %932 = vmatprep.subr.bf16.mxu0 0
        %933 = vmatpush1.bf16.msra.mxu0 %v837
        %934 = vmatprep.subr.bf16.mxu0 0
        %935 = vmatpush1.bf16.msra.mxu0 %v838
        %936 = vmatprep.subr.bf16.mxu0 0
        %937 = vmatpush1.bf16.msra.mxu0 %v839
        %938 = vmatprep.subr.bf16.mxu0 0
        %939 = vmatpush1.bf16.msra.mxu0 %v840
        %940 = vmatprep.subr.bf16.mxu0 0
        %941 = vmatpush1.bf16.msra.mxu0 %v841
        %942 = vmatprep.subr.bf16.mxu0 0
        %943 = vmatpush1.bf16.msra.mxu0 %v842
        %944 = vmatprep.subr.bf16.mxu0 0
        %945 = vmatpush1.bf16.msra.mxu0 %v843
        %946 = vmatprep.subr.bf16.mxu0 0
        %947 = vmatpush1.bf16.msra.mxu0 %v844
        %948 = vmatprep.subr.bf16.mxu0 0
        %949 = vmatpush1.bf16.msra.mxu0 %v845
        %950 = vmatprep.mubr.bf16.mxu0 %v614
        %951 = vmatmul.mubr.bf16.gmra.mrb[0].mxu0 %v613
        %v952 = vpop.f32.mrb[0].mxu0
        %v953 = vadd.f32 %v913, %v952
        %v954 = vpop.f32.mrb[0].mxu0
        %v955 = vpop.f32.mrb[0].mxu0
        %v956 = vpop.f32.mrb[0].mxu0
        %957 = vdwg.mxu0
        %958 = vst [vmem:[%s268] sm:$0xff] %v953
        %s959 = sand.u32 %s141, 1
        %s960 = scalar_lea.sflag [#allocation4], %s959
        %s961 = sand.u32 %s141, 1
        %s962 = smul.addr %s961, 8
        %s963 = scalar_lea.vmem [#allocation8], %s962
        // Predicated region
        $region53: #{tpu_custom_call.1} parent=39 // pred_check
          %p964 = pneg %p151
        $region54: #{tpu_custom_call.1} parent=39 // pred_check_branch
          %966 = sbr.rel (%p964) target = $region56
        $region55: #{tpu_custom_call.1} parent=39 // pred_region
          %s968 = ssub.s32 128, 128
          %969 = vsyncadd %s960, %s968
          %s970 = smul.addr %s23, 128
          %s971 = scalar_lea.hbm %s5, %s970
          %s973 = sshll.u32 %s963, 4
          %s974 = int_to_ptr.vmem [resolvable:$true] %s973
          %976 = dma.vmem_to_hbm [thread:$0]  %s974, 128, %s971, %s960
        $region56: #{tpu_custom_call.1} parent=39 // pred_fallthru
          _
      $region40: #{tpu_custom_call.1} parent=5 // pred_fallthru
        _
      %p977 = scmp.le.s32.totalorder 2, %s18
      // Predicated region
      $region57: #{tpu_custom_call.1} parent=5 // pred_check
        %p978 = pneg %p977
      $region58: #{tpu_custom_call.1} parent=5 // pred_check_branch
        %980 = sbr.rel (%p978) target = $region60
      $region59: #{tpu_custom_call.1} parent=5 // pred_region
        %s981 = ssub.s32 %s18, 2
        // Predicated region
        $region61: #{tpu_custom_call.1} parent=59 // pred_check
          %p982 = pneg %p157
        $region62: #{tpu_custom_call.1} parent=59 // pred_check_branch
          %984 = sbr.rel (%p982) target = $region64
        $region63: #{tpu_custom_call.1} parent=59 // pred_region
          %s985 = sand.u32 %s142, 1
          %s986 = scalar_lea.sflag [#allocation4], %s985
          %s987 = sand.u32 %s142, 1
          %s988 = smul.addr %s987, 8
          %s989 = scalar_lea.vmem [#allocation8], %s988
          %990 = dma.done %s986, 128
        $region64: #{tpu_custom_call.1} parent=59 // pred_fallthru
          _
      $region60: #{tpu_custom_call.1} parent=5 // pred_fallthru
        _
    $region6: #{tpu_custom_call.1} parent=1 // loop_footer
      %s22 = sadd.s32 1, %s18
    $region7: #{tpu_custom_call.1} parent=1 // loop_footer_branch
      %17 = sbr.rel target = $region3
    $region8: #{tpu_custom_call.1} parent=1 // loop_exit
      _
    %991 = vsyncpa [#allocation3], 1
    %s992 = scalar_lea.sflag [#allocation3], 1
    %993 = vsyncpa %s992, 1
    %994 = vsyncpa [#allocation6], 1
    %995 = vsyncpa [#allocation4], 1
    %s996 = scalar_lea.sflag [#allocation4], 1
    %997 = vsyncpa %s996, 1

// kernel: tpu_custom_call.1
$region0: #{tpu_custom_call.1}
  #allocation0 [shape = 'u32[]', space=smem, size = 0x4, offset = 0x4, fixed_abs, tag = 'smem constant byte address 0x4 - core index']
  #allocation1 [shape = 'u32[144,128]{1,0:T(1,128)}', space=vmem, size = 0x12000, scoped, tag = 'internal scratch']
  %s0 = inlined_call_operand.hbm [shape: f32[16,128], index: 0, kind: input, shape index: {}]
  %s1 = inlined_call_operand.hbm [shape: bf16[128,512], index: 1, kind: input, shape index: {}]
  %s2 = inlined_call_operand.vmem [shape: f32[1,512], index: 2, kind: input, shape index: {}]
  %s3 = inlined_call_operand.hbm [shape: bf16[512,128], index: 3, kind: input, shape index: {}]
  %s4 = inlined_call_operand.vmem [shape: f32[1,128], index: 4, kind: input, shape index: {}]
  %s5 = inlined_call_operand.hbm [shape: f32[16,128], index: 5, kind: output, shape index: {}]
  %s6 = sld [smem:[#allocation0]]
  $region65: #{tpu_custom_call.1} parent=0
    _
  %s8 = ssub.s32 1, %s6
  %s9 = scalar_select 0, %s8, %s6
  $region1: #{tpu_custom_call.1} parent=0
    #allocation2 [shape = 'u8[8192]{0}', space=vmem, size = 0x2000, scoped, tag = 'input window, operand 0']
    #allocation3 [shape = 's32[2]{0}', space=sflag, size = 0x8, scoped, tag = 'scoped memory for tpu_custom_call.1']
    #allocation4 [shape = 's32[2]{0}', space=sflag, size = 0x8, scoped, tag = 'scoped memory for tpu_custom_call.1']
    #allocation5 [shape = 'u8[131072]{0}', space=vmem, size = 0x20000, scoped, tag = 'input window, operand 1, single buffered']
    #allocation6 [shape = 's32[1]{0}', space=sflag, size = 0x4, scoped, tag = 'scoped memory for tpu_custom_call.1']
    #allocation7 [shape = 'u8[131072]{0}', space=vmem, size = 0x20000, scoped, tag = 'input window, operand 3, single buffered']
    #allocation8 [shape = 'u8[8192]{0}', space=vmem, size = 0x2000, scoped, tag = 'output window, operand 0']
    %10 = vsyncpa [#allocation3], 0
    %s11 = scalar_lea.sflag [#allocation3], 1
    %12 = vsyncpa %s11, 0
    %13 = vsyncpa [#allocation6], 0
    %14 = vsyncpa [#allocation4], 0
    %s15 = scalar_lea.sflag [#allocation4], 1
    %16 = vsyncpa %s15, 0
    loop: start=0, step=1, limit=4
    $region2: #{tpu_custom_call.1} parent=1 // loop_pre_header
      _
    $region3: #{tpu_custom_call.1} parent=1 // loop_header
      %s18 = sphi 0, %s22
      %p19 = scmp.ge.s32.totalorder %s18, 4
      %s28 = sphi 0, %s30
      %s31 = sphi 0, %s28
      %s32 = sphi 0, %s31
      %s48 = sphi 0, %s32
      %s52 = sphi 0, %s52
      %s54 = sphi 0, %s52
      %s55 = sphi 0, %s54
      %s69 = sphi 0, %s55
      %s73 = sphi 0, %s73
      %s75 = sphi 0, %s73
      %s76 = sphi 0, %s75
      %s90 = sphi 0, %s76
      %s94 = sphi 0, %s94
      %s96 = sphi 0, %s94
      %s97 = sphi 0, %s96
      %s111 = sphi 0, %s97
      %s115 = sphi 0, %s115
      %s117 = sphi 0, %s115
      %s118 = sphi 0, %s117
      %s132 = sphi 0, %s118
      %s138 = sphi 0, %s140
      %s141 = sphi 0, %s138
      %s142 = sphi 0, %s141
      %s158 = sphi 0, %s142
    $region4: #{tpu_custom_call.1} parent=1 // loop_header_branch
      %21 = sbr.rel (%p19) target = $region8
    $region5: #{tpu_custom_call.1} parent=1 // loop_body
      %s23 = ssub.s32 %s18, 1
      %s24 = ssub.s32 %s18, 2
      %s25 = sadd.s32 %s18, 1
      %s26 = ssub.s32 %s18, %s25
      %p27 = scmp.eq.s32.totalorder %s26, 0
      %s29 = sadd.s32 %s28, 1
      %s30 = scalar_select %p27, %s28, %s29
      %p33 = pneg %p27
      %p34 = scmp.eq.s32.totalorder %s18, 1
      %p35 = por %p33, %p34
      %p36 = scmp.ne.s32.totalorder %s28, %s31
      %p37 = scmp.eq.s32.totalorder %s18, 0
      %p38 = por %p36, %p37
      %p39 = scmp.ne.s32.totalorder %s28, %s31
      %p40 = scmp.eq.s32.totalorder %s23, 1
      %p41 = por %p39, %p40
      %p42 = scmp.ne.s32.totalorder %s31, %s32
      %p43 = scmp.eq.s32.totalorder %s23, 0
      %p44 = por %p42, %p43
      %p45 = scmp.ne.s32.totalorder %s31, %s32
      %p46 = scmp.eq.s32.totalorder %s24, 1
      %p47 = por %p45, %p46
      %p49 = scmp.ne.s32.totalorder %s32, %s48
      %p50 = scmp.eq.s32.totalorder %s24, 0
      %p51 = por %p49, %p50
      %s53 = sadd.s32 %s52, 1
      %p56 = scmp.eq.s32.totalorder %s18, 1
      %p57 = scmp.ne.s32.totalorder %s52, %s54
      %p58 = scmp.eq.s32.totalorder %s18, 0
      %p59 = por %p57, %p58
      %p60 = scmp.ne.s32.totalorder %s52, %s54
      %p61 = scmp.eq.s32.totalorder %s23, 1
      %p62 = por %p60, %p61
      %p63 = scmp.ne.s32.totalorder %s54, %s55
      %p64 = scmp.eq.s32.totalorder %s23, 0
      %p65 = por %p63, %p64
      %p66 = scmp.ne.s32.totalorder %s54, %s55
      %p67 = scmp.eq.s32.totalorder %s24, 1
      %p68 = por %p66, %p67
      %p70 = scmp.ne.s32.totalorder %s55, %s69
      %p71 = scmp.eq.s32.totalorder %s24, 0
      %p72 = por %p70, %p71
      %s74 = sadd.s32 %s73, 1
      %p77 = scmp.eq.s32.totalorder %s18, 1
      %p78 = scmp.ne.s32.totalorder %s73, %s75
      %p79 = scmp.eq.s32.totalorder %s18, 0
      %p80 = por %p78, %p79
      %p81 = scmp.ne.s32.totalorder %s73, %s75
      %p82 = scmp.eq.s32.totalorder %s23, 1
      %p83 = por %p81, %p82
      %p84 = scmp.ne.s32.totalorder %s75, %s76
      %p85 = scmp.eq.s32.totalorder %s23, 0
      %p86 = por %p84, %p85
      %p87 = scmp.ne.s32.totalorder %s75, %s76
      %p88 = scmp.eq.s32.totalorder %s24, 1
      %p89 = por %p87, %p88
      %p91 = scmp.ne.s32.totalorder %s76, %s90
      %p92 = scmp.eq.s32.totalorder %s24, 0
      %p93 = por %p91, %p92
      %s95 = sadd.s32 %s94, 1
      %p98 = scmp.eq.s32.totalorder %s18, 1
      %p99 = scmp.ne.s32.totalorder %s94, %s96
      %p100 = scmp.eq.s32.totalorder %s18, 0
      %p101 = por %p99, %p100
      %p102 = scmp.ne.s32.totalorder %s94, %s96
      %p103 = scmp.eq.s32.totalorder %s23, 1
      %p104 = por %p102, %p103
      %p105 = scmp.ne.s32.totalorder %s96, %s97
      %p106 = scmp.eq.s32.totalorder %s23, 0
      %p107 = por %p105, %p106
      %p108 = scmp.ne.s32.totalorder %s96, %s97
      %p109 = scmp.eq.s32.totalorder %s24, 1
      %p110 = por %p108, %p109
      %p112 = scmp.ne.s32.totalorder %s97, %s111
      %p113 = scmp.eq.s32.totalorder %s24, 0
      %p114 = por %p112, %p113
      %s116 = sadd.s32 %s115, 1
      %p119 = scmp.eq.s32.totalorder %s18, 1
      %p120 = scmp.ne.s32.totalorder %s115, %s117
      %p121 = scmp.eq.s32.totalorder %s18, 0
      %p122 = por %p120, %p121
      %p123 = scmp.ne.s32.totalorder %s115, %s117
      %p124 = scmp.eq.s32.totalorder %s23, 1
      %p125 = por %p123, %p124
      %p126 = scmp.ne.s32.totalorder %s117, %s118
      %p127 = scmp.eq.s32.totalorder %s23, 0
      %p128 = por %p126, %p127
      %p129 = scmp.ne.s32.totalorder %s117, %s118
      %p130 = scmp.eq.s32.totalorder %s24, 1
      %p131 = por %p129, %p130
      %p133 = scmp.ne.s32.totalorder %s118, %s132
      %p134 = scmp.eq.s32.totalorder %s24, 0
      %p135 = por %p133, %p134
      %s136 = ssub.s32 %s18, %s25
      %p137 = scmp.eq.s32.totalorder %s136, 0
      %s139 = sadd.s32 %s138, 1
      %s140 = scalar_select %p137, %s138, %s139
      %p143 = pneg %p137
      %p144 = scmp.eq.s32.totalorder %s18, 1
      %p145 = por %p143, %p144
      %p146 = scmp.ne.s32.totalorder %s138, %s141
      %p147 = scmp.eq.s32.totalorder %s18, 0
      %p148 = por %p146, %p147
      %p149 = scmp.ne.s32.totalorder %s138, %s141
      %p150 = scmp.eq.s32.totalorder %s23, 1
      %p151 = por %p149, %p150
      %p152 = scmp.ne.s32.totalorder %s141, %s142
      %p153 = scmp.eq.s32.totalorder %s23, 0
      %p154 = por %p152, %p153
      %p155 = scmp.ne.s32.totalorder %s141, %s142
      %p156 = scmp.eq.s32.totalorder %s24, 1
      %p157 = por %p155, %p156
      %p159 = scmp.ne.s32.totalorder %s142, %s158
      %p160 = scmp.eq.s32.totalorder %s24, 0
      %p161 = por %p159, %p160
      %p162 = scmp.le.s32.totalorder 1, %s18
      %p163 = scmp.lt.s32.totalorder %s18, 3
      %p164 = pnand %p162, %p163
      %p165 = pneg %p164
      // Predicated region
      $region9: #{tpu_custom_call.1} parent=5 // pred_check
        _
      $region10: #{tpu_custom_call.1} parent=5 // pred_check_branch
        %167 = sbr.rel (%p164) target = $region12
      $region11: #{tpu_custom_call.1} parent=5 // pred_region
        %s168 = ssub.s32 %s18, 1
        // Predicated region
        $region13: #{tpu_custom_call.1} parent=11 // pred_check
          %p169 = pneg %p65
        $region14: #{tpu_custom_call.1} parent=11 // pred_check_branch
          %171 = sbr.rel (%p169) target = $region16
        $region15: #{tpu_custom_call.1} parent=11 // pred_region
          %s173 = ssub.s32 4096, 4096
          %174 = vsyncadd [#allocation6], %s173
          %s175 = sshll.u32 [#allocation5], 4
          %s176 = int_to_ptr.vmem [resolvable:$true] %s175
          %181 = dma.hbm_to_vmem [thread:$0]  %s1, 4096, %s176, [#allocation6], 256, 256, 16
        $region16: #{tpu_custom_call.1} parent=11 // pred_fallthru
          _
        // Predicated region
        $region17: #{tpu_custom_call.1} parent=11 // pred_check
          %p182 = pneg %p86
        $region18: #{tpu_custom_call.1} parent=11 // pred_check_branch
          %184 = sbr.rel (%p182) target = $region20
        $region19: #{tpu_custom_call.1} parent=11 // pred_region
          _
        $region20: #{tpu_custom_call.1} parent=11 // pred_fallthru
          _
        // Predicated region
        $region21: #{tpu_custom_call.1} parent=11 // pred_check
          %p185 = pneg %p107
        $region22: #{tpu_custom_call.1} parent=11 // pred_check_branch
          %187 = sbr.rel (%p185) target = $region24
        $region23: #{tpu_custom_call.1} parent=11 // pred_region
          %s189 = ssub.s32 4096, 4096
          %190 = vsyncadd [#allocation6], %s189
          %s191 = sshll.u32 [#allocation7], 4
          %s192 = int_to_ptr.vmem [resolvable:$true] %s191
          %197 = dma.hbm_to_vmem [thread:$0]  %s3, 4096, %s192, [#allocation6], 64, 64, 4
        $region24: #{tpu_custom_call.1} parent=11 // pred_fallthru
          _
        // Predicated region
        $region25: #{tpu_custom_call.1} parent=11 // pred_check
          %p198 = pneg %p128
        $region26: #{tpu_custom_call.1} parent=11 // pred_check_branch
          %200 = sbr.rel (%p198) target = $region28
        $region27: #{tpu_custom_call.1} parent=11 // pred_region
          _
        $region28: #{tpu_custom_call.1} parent=11 // pred_fallthru
          _
      $region12: #{tpu_custom_call.1} parent=5 // pred_fallthru
        _
      %p201 = scmp.lt.s32.totalorder %s18, 2
      // Predicated region
      $region29: #{tpu_custom_call.1} parent=5 // pred_check
        %p202 = pneg %p201
      $region30: #{tpu_custom_call.1} parent=5 // pred_check_branch
        %204 = sbr.rel (%p202) target = $region32
      $region31: #{tpu_custom_call.1} parent=5 // pred_region
        // Predicated region
        $region33: #{tpu_custom_call.1} parent=31 // pred_check
          %p205 = pneg %p38
        $region34: #{tpu_custom_call.1} parent=31 // pred_check_branch
          %207 = sbr.rel (%p205) target = $region36
        $region35: #{tpu_custom_call.1} parent=31 // pred_region
          %s208 = sand.u32 %s28, 1
          %s209 = scalar_lea.sflag [#allocation3], %s208
          %s210 = sand.u32 %s28, 1
          %s211 = smul.addr %s210, 8
          %s212 = scalar_lea.vmem [#allocation2], %s211
          %s214 = ssub.s32 128, 128
          %215 = vsyncadd %s209, %s214
          %s216 = smul.addr %s18, 128
          %s217 = scalar_lea.hbm %s0, %s216
          %s219 = sshll.u32 %s212, 4
          %s220 = int_to_ptr.vmem [resolvable:$true] %s219
          %222 = dma.hbm_to_vmem [thread:$0]  %s217, 128, %s220, %s209
        $region36: #{tpu_custom_call.1} parent=31 // pred_fallthru
          _
      $region32: #{tpu_custom_call.1} parent=5 // pred_fallthru
        _
      %p223 = scmp.le.s32.totalorder 1, %s18
      %p224 = scmp.lt.s32.totalorder %s18, 3
      %p225 = pnand %p223, %p224
      %p226 = pneg %p225
      // Predicated region
      $region37: #{tpu_custom_call.1} parent=5 // pred_check
        _
      $region38: #{tpu_custom_call.1} parent=5 // pred_check_branch
        %228 = sbr.rel (%p225) target = $region40
      $region39: #{tpu_custom_call.1} parent=5 // pred_region
        %s229 = ssub.s32 %s18, 1
        %s230 = sand.u32 %s31, 1
        %s231 = scalar_lea.sflag [#allocation3], %s230
        %s232 = sand.u32 %s31, 1
        %s233 = smul.addr %s232, 8
        %s234 = scalar_lea.vmem [#allocation2], %s233
        // Predicated region
        $region41: #{tpu_custom_call.1} parent=39 // pred_check
          %p235 = pneg %p44
        $region42: #{tpu_custom_call.1} parent=39 // pred_check_branch
          %237 = sbr.rel (%p235) target = $region44
        $region43: #{tpu_custom_call.1} parent=39 // pred_region
          %238 = dma.done %s231, 128
        $region44: #{tpu_custom_call.1} parent=39 // pred_fallthru
          _
        // Predicated region
        $region45: #{tpu_custom_call.1} parent=39 // pred_check
          %p239 = pneg %p65
        $region46: #{tpu_custom_call.1} parent=39 // pred_check_branch
          %241 = sbr.rel (%p239) target = $region48
        $region47: #{tpu_custom_call.1} parent=39 // pred_region
          %242 = dma.done [#allocation6], 4096
        $region48: #{tpu_custom_call.1} parent=39 // pred_fallthru
          _
        // Predicated region
        $region49: #{tpu_custom_call.1} parent=39 // pred_check
          %p243 = pneg %p107
        $region50: #{tpu_custom_call.1} parent=39 // pred_check_branch
          %245 = sbr.rel (%p243) target = $region52
        $region51: #{tpu_custom_call.1} parent=39 // pred_region
          %246 = dma.done [#allocation6], 4096
        $region52: #{tpu_custom_call.1} parent=39 // pred_fallthru
          _
        %s247 = sand.u32 %s31, 1
        %s248 = scalar_lea.sflag [#allocation3], %s247
        %s249 = sand.u32 %s31, 1
        %s250 = smul.addr %s249, 8
        %s251 = scalar_lea.vmem [#allocation2], %s250
        %p252 = pneg %p44
        %p253 = pneg %p41
        %p254 = pneg %p65
        %p255 = pneg %p62
        %p256 = pneg %p86
        %p257 = pneg %p83
        %p258 = pneg %p107
        %p259 = pneg %p104
        %p260 = pneg %p128
        %p261 = pneg %p125
        %p262 = pneg %p154
        %p263 = pneg %p151
        %s264 = sand.u32 %s141, 1
        %s265 = scalar_lea.sflag [#allocation4], %s264
        %s266 = sand.u32 %s141, 1
        %s267 = smul.addr %s266, 8
        %s268 = scalar_lea.vmem [#allocation8], %s267
        %v270 = vld [vmem:[%s234] sm:$0xff]
        %271 = vadd.xlane.f32.xlu0 %v270
        %v272 = vpop.xlane.xlu0 %271
        %v273 = vrcp.pop 128.0
        %v274 = vmul.f32 %v272, %v273
        %v275 = vsub.f32 %v270, %v274
        %v276 = vmul.f32 %v275, %v275
        %277 = vadd.xlane.f32.xlu0 %v276
        %v278 = vpop.xlane.xlu0 %277
        %v279 = vmul.f32 %v278, %v273
        %v280 = vadd.f32 %v279, 1e-05
        %v281 = vrsqrt.pop %v280
        %v282 = vmul.f32 %v275, %v281
        %v283 = vpack.c.bf16 %v282, %v282
        %v284 = vld [vmem:[#allocation5] sm:$0xff]
        %v285 = vld [vmem:[#allocation5 + $0x8] sm:$0xff]
        %v286 = vld [vmem:[#allocation5 + $0x10] sm:$0xff]
        %v287 = vld [vmem:[#allocation5 + $0x18] sm:$0xff]
        %v288 = vld [vmem:[#allocation5 + $0x20] sm:$0xff]
        %v289 = vld [vmem:[#allocation5 + $0x28] sm:$0xff]
        %v290 = vld [vmem:[#allocation5 + $0x30] sm:$0xff]
        %v291 = vld [vmem:[#allocation5 + $0x38] sm:$0xff]
        %v292 = vld [vmem:[#allocation5 + $0x40] sm:$0xff]
        %v293 = vld [vmem:[#allocation5 + $0x48] sm:$0xff]
        %v294 = vld [vmem:[#allocation5 + $0x50] sm:$0xff]
        %v295 = vld [vmem:[#allocation5 + $0x58] sm:$0xff]
        %v296 = vld [vmem:[#allocation5 + $0x60] sm:$0xff]
        %v297 = vld [vmem:[#allocation5 + $0x68] sm:$0xff]
        %v298 = vld [vmem:[#allocation5 + $0x70] sm:$0xff]
        %v299 = vld [vmem:[#allocation5 + $0x78] sm:$0xff]
        %v300 = vld [vmem:[#allocation5 + $0x80] sm:$0xff]
        %v301 = vld [vmem:[#allocation5 + $0x88] sm:$0xff]
        %v302 = vld [vmem:[#allocation5 + $0x90] sm:$0xff]
        %v303 = vld [vmem:[#allocation5 + $0x98] sm:$0xff]
        %v304 = vld [vmem:[#allocation5 + $0xa0] sm:$0xff]
        %v305 = vld [vmem:[#allocation5 + $0xa8] sm:$0xff]
        %v306 = vld [vmem:[#allocation5 + $0xb0] sm:$0xff]
        %v307 = vld [vmem:[#allocation5 + $0xb8] sm:$0xff]
        %v308 = vld [vmem:[#allocation5 + $0xc0] sm:$0xff]
        %v309 = vld [vmem:[#allocation5 + $0xc8] sm:$0xff]
        %v310 = vld [vmem:[#allocation5 + $0xd0] sm:$0xff]
        %v311 = vld [vmem:[#allocation5 + $0xd8] sm:$0xff]
        %v312 = vld [vmem:[#allocation5 + $0xe0] sm:$0xff]
        %v313 = vld [vmem:[#allocation5 + $0xe8] sm:$0xff]
        %v314 = vld [vmem:[#allocation5 + $0xf0] sm:$0xff]
        %v315 = vld [vmem:[#allocation5 + $0xf8] sm:$0xff]
        %v316 = vld [vmem:[%s2] sm:$0xf]
        %v318 = vlaneseq
        %v319 = vshrl.u32 %v318, 7
        %v320 = vsub.s32 0, %v319
        %v321 = vrot.slane %v316, %v320
        %v322 = vlaneseq
        %v323 = vshrl.u32 %v322, 7
        %v324 = vsub.s32 1, %v323
        %v325 = vrot.slane %v316, %v324
        %v326 = vlaneseq
        %v327 = vshrl.u32 %v326, 7
        %v328 = vsub.s32 2, %v327
        %v329 = vrot.slane %v316, %v328
        %v330 = vlaneseq
        %v331 = vshrl.u32 %v330, 7
        %v332 = vsub.s32 3, %v331
        %v333 = vrot.slane %v316, %v332
        %v370 = vunpack.c.l.b16 %v284
        %v371 = vunpack.c.h.b16 %v284
        %v372 = vunpack.c.l.b16 %v285
        %v373 = vunpack.c.h.b16 %v285
        %v374 = vunpack.c.l.b16 %v286
        %v375 = vunpack.c.h.b16 %v286
        %v376 = vunpack.c.l.b16 %v287
        %v377 = vunpack.c.h.b16 %v287
        %v378 = vunpack.c.l.b16 %v288
        %v379 = vunpack.c.h.b16 %v288
        %v380 = vunpack.c.l.b16 %v289
        %v381 = vunpack.c.h.b16 %v289
        %v382 = vunpack.c.l.b16 %v290
        %v383 = vunpack.c.h.b16 %v290
        %v384 = vunpack.c.l.b16 %v291
        %v385 = vunpack.c.h.b16 %v291
        %v386 = vunpack.c.l.b16 %v292
        %v387 = vunpack.c.h.b16 %v292
        %v388 = vunpack.c.l.b16 %v293
        %v389 = vunpack.c.h.b16 %v293
        %v390 = vunpack.c.l.b16 %v294
        %v391 = vunpack.c.h.b16 %v294
        %v392 = vunpack.c.l.b16 %v295
        %v393 = vunpack.c.h.b16 %v295
        %v394 = vunpack.c.l.b16 %v296
        %v395 = vunpack.c.h.b16 %v296
        %v396 = vunpack.c.l.b16 %v297
        %v397 = vunpack.c.h.b16 %v297
        %v398 = vunpack.c.l.b16 %v298
        %v399 = vunpack.c.h.b16 %v298
        %v400 = vunpack.c.l.b16 %v299
        %v401 = vunpack.c.h.b16 %v299
        %v402 = vunpack.c.l.b16 %v300
        %v403 = vunpack.c.h.b16 %v300
        %v404 = vunpack.c.l.b16 %v301
        %v405 = vunpack.c.h.b16 %v301
        %v406 = vunpack.c.l.b16 %v302
        %v407 = vunpack.c.h.b16 %v302
        %v408 = vunpack.c.l.b16 %v303
        %v409 = vunpack.c.h.b16 %v303
        %v410 = vunpack.c.l.b16 %v304
        %v411 = vunpack.c.h.b16 %v304
        %v412 = vunpack.c.l.b16 %v305
        %v413 = vunpack.c.h.b16 %v305
        %v414 = vunpack.c.l.b16 %v306
        %v415 = vunpack.c.h.b16 %v306
        %v416 = vunpack.c.l.b16 %v307
        %v417 = vunpack.c.h.b16 %v307
        %v418 = vunpack.c.l.b16 %v308
        %v419 = vunpack.c.h.b16 %v308
        %v420 = vunpack.c.l.b16 %v309
        %v421 = vunpack.c.h.b16 %v309
        %v422 = vunpack.c.l.b16 %v310
        %v423 = vunpack.c.h.b16 %v310
        %v424 = vunpack.c.l.b16 %v311
        %v425 = vunpack.c.h.b16 %v311
        %v426 = vunpack.c.l.b16 %v312
        %v427 = vunpack.c.h.b16 %v312
        %v428 = vunpack.c.l.b16 %v313
        %v429 = vunpack.c.h.b16 %v313
        %v430 = vunpack.c.l.b16 %v314
        %v431 = vunpack.c.h.b16 %v314
        %v432 = vunpack.c.l.b16 %v315
        %v433 = vunpack.c.h.b16 %v315
        %v434 = vpack.c.b16 %v374, %v370
        %v435 = vpack.c.b16 %v375, %v371
        %v436 = vpack.c.b16 %v376, %v372
        %v437 = vpack.c.b16 %v377, %v373
        %v438 = vpack.c.b16 %v382, %v378
        %v439 = vpack.c.b16 %v383, %v379
        %v440 = vpack.c.b16 %v384, %v380
        %v441 = vpack.c.b16 %v385, %v381
        %v442 = vpack.c.b16 %v390, %v386
        %v443 = vpack.c.b16 %v391, %v387
        %v444 = vpack.c.b16 %v392, %v388
        %v445 = vpack.c.b16 %v393, %v389
        %v446 = vpack.c.b16 %v398, %v394
        %v447 = vpack.c.b16 %v399, %v395
        %v448 = vpack.c.b16 %v400, %v396
        %v449 = vpack.c.b16 %v401, %v397
        %v450 = vpack.c.b16 %v406, %v402
        %v451 = vpack.c.b16 %v407, %v403
        %v452 = vpack.c.b16 %v408, %v404
        %v453 = vpack.c.b16 %v409, %v405
        %v454 = vpack.c.b16 %v414, %v410
        %v455 = vpack.c.b16 %v415, %v411
        %v456 = vpack.c.b16 %v416, %v412
        %v457 = vpack.c.b16 %v417, %v413
        %v458 = vpack.c.b16 %v422, %v418
        %v459 = vpack.c.b16 %v423, %v419
        %v460 = vpack.c.b16 %v424, %v420
        %v461 = vpack.c.b16 %v425, %v421
        %v462 = vpack.c.b16 %v430, %v426
        %v463 = vpack.c.b16 %v431, %v427
        %v464 = vpack.c.b16 %v432, %v428
        %v465 = vpack.c.b16 %v433, %v429
        %498 = vmatprep.subr.bf16.mxu0 %v435
        %499 = vmatpush1.bf16.msra.mxu0 %v434
        %500 = vmatprep.subr.bf16.mxu0 %v439
        %501 = vmatpush1.bf16.msra.mxu0 %v438
        %502 = vmatprep.subr.bf16.mxu0 %v443
        %503 = vmatpush1.bf16.msra.mxu0 %v442
        %504 = vmatprep.subr.bf16.mxu0 %v447
        %505 = vmatpush1.bf16.msra.mxu0 %v446
        %506 = vmatprep.subr.bf16.mxu0 %v451
        %507 = vmatpush1.bf16.msra.mxu0 %v450
        %508 = vmatprep.subr.bf16.mxu0 %v455
        %509 = vmatpush1.bf16.msra.mxu0 %v454
        %510 = vmatprep.subr.bf16.mxu0 %v459
        %511 = vmatpush1.bf16.msra.mxu0 %v458
        %512 = vmatprep.subr.bf16.mxu0 %v463
        %513 = vmatpush1.bf16.msra.mxu0 %v462
        %514 = vmatprep.subr.bf16.mxu0 0
        %515 = vmatpush1.bf16.msra.mxu0 0
        %516 = vmatprep.subr.bf16.mxu0 0
        %517 = vmatpush1.bf16.msra.mxu0 0
        %518 = vmatprep.subr.bf16.mxu0 0
        %519 = vmatpush1.bf16.msra.mxu0 0
        %520 = vmatprep.subr.bf16.mxu0 0
        %521 = vmatpush1.bf16.msra.mxu0 0
        %522 = vmatprep.subr.bf16.mxu0 0
        %523 = vmatpush1.bf16.msra.mxu0 0
        %524 = vmatprep.subr.bf16.mxu0 0
        %525 = vmatpush1.bf16.msra.mxu0 0
        %526 = vmatprep.subr.bf16.mxu0 0
        %527 = vmatpush1.bf16.msra.mxu0 0
        %528 = vmatprep.subr.bf16.mxu0 0
        %529 = vmatpush1.bf16.msra.mxu0 0
        %530 = vmatprep.mubr.bf16.mxu0 0
        %531 = vmatmul.mubr.bf16.gmra.mrb[0].mxu0 %v283
        %v532 = vpop.f32.mrb[0].mxu0
        %v533 = vadd.f32 %v321, %v532
        %v534 = vpop.f32.mrb[0].mxu0
        %v535 = vadd.f32 %v325, %v534
        %v536 = vpop.f32.mrb[0].mxu0
        %v537 = vpop.f32.mrb[0].mxu0
        %538 = vdwg.mxu0
        %539 = vmatprep.subr.bf16.mxu0 %v437
        %540 = vmatpush1.bf16.msra.mxu0 %v436
        %541 = vmatprep.subr.bf16.mxu0 %v441
        %542 = vmatpush1.bf16.msra.mxu0 %v440
        %543 = vmatprep.subr.bf16.mxu0 %v445
        %544 = vmatpush1.bf16.msra.mxu0 %v444
        %545 = vmatprep.subr.bf16.mxu0 %v449
        %546 = vmatpush1.bf16.msra.mxu0 %v448
        %547 = vmatprep.subr.bf16.mxu0 %v453
        %548 = vmatpush1.bf16.msra.mxu0 %v452
        %549 = vmatprep.subr.bf16.mxu0 %v457
        %550 = vmatpush1.bf16.msra.mxu0 %v456
        %551 = vmatprep.subr.bf16.mxu0 %v461
        %552 = vmatpush1.bf16.msra.mxu0 %v460
        %553 = vmatprep.subr.bf16.mxu0 %v465
        %554 = vmatpush1.bf16.msra.mxu0 %v464
        %555 = vmatprep.subr.bf16.mxu0 0
        %556 = vmatpush1.bf16.msra.mxu0 0
        %557 = vmatprep.subr.bf16.mxu0 0
        %558 = vmatpush1.bf16.msra.mxu0 0
        %559 = vmatprep.subr.bf16.mxu0 0
        %560 = vmatpush1.bf16.msra.mxu0 0
        %561 = vmatprep.subr.bf16.mxu0 0
        %562 = vmatpush1.bf16.msra.mxu0 0
        %563 = vmatprep.subr.bf16.mxu0 0
        %564 = vmatpush1.bf16.msra.mxu0 0
        %565 = vmatprep.subr.bf16.mxu0 0
        %566 = vmatpush1.bf16.msra.mxu0 0
        %567 = vmatprep.subr.bf16.mxu0 0
        %568 = vmatpush1.bf16.msra.mxu0 0
        %569 = vmatprep.subr.bf16.mxu0 0
        %570 = vmatpush1.bf16.msra.mxu0 0
        %571 = vmatprep.mubr.bf16.mxu0 0
        %572 = vmatmul.mubr.bf16.gmra.mrb[0].mxu0 %v283
        %v573 = vpop.f32.mrb[0].mxu0
        %v574 = vadd.f32 %v329, %v573
        %v575 = vpop.f32.mrb[0].mxu0
        %v576 = vadd.f32 %v333, %v575
        %v577 = vpop.f32.mrb[0].mxu0
        %v578 = vpop.f32.mrb[0].mxu0
        %579 = vdwg.mxu0
        %v580 = vmax.f32 %v533, 0.0
        %v581 = vmax.f32 %v535, 0.0
        %v582 = vmax.f32 %v574, 0.0
        %v583 = vmax.f32 %v576, 0.0
        %v584 = vadd.f32 %v580, %v581
        %v585 = vadd.f32 %v584, %v582
        %v586 = vadd.f32 %v585, %v583
        %587 = vadd.xlane.f32.xlu0 %v586
        %v588 = vpop.xlane.xlu0 %587
        %v589 = vrcp.pop 512.0
        %v590 = vmul.f32 %v588, %v589
        %v591 = vsub.f32 %v580, %v590
        %v592 = vsub.f32 %v581, %v590
        %v593 = vsub.f32 %v582, %v590
        %v594 = vsub.f32 %v583, %v590
        %v595 = vmul.f32 %v591, %v591
        %v596 = vmul.f32 %v592, %v592
        %v597 = vmul.f32 %v593, %v593
        %v598 = vmul.f32 %v594, %v594
        %v599 = vadd.f32 %v595, %v596
        %v600 = vadd.f32 %v599, %v597
        %v601 = vadd.f32 %v600, %v598
        %602 = vadd.xlane.f32.xlu0 %v601
        %v603 = vpop.xlane.xlu0 %602
        %v604 = vmul.f32 %v603, %v589
        %v605 = vadd.f32 %v604, 1e-05
        %v606 = vrsqrt.pop %v605
        %v607 = vmul.f32 %v591, %v606
        %v608 = vmul.f32 %v592, %v606
        %v609 = vmul.f32 %v593, %v606
        %v610 = vmul.f32 %v594, %v606
        %v611 = vpack.c.bf16 %v607, %v607
        %v612 = vpack.c.bf16 %v608, %v608
        %v613 = vpack.c.bf16 %v609, %v609
        %v614 = vpack.c.bf16 %v610, %v610
        %v615 = vld [vmem:[#allocation7] sm:$0xf]
        %v616 = vld [vmem:[#allocation7 + $0x4] sm:$0xf]
        %v617 = vld [vmem:[#allocation7 + $0x8] sm:$0xf]
        %v618 = vld [vmem:[#allocation7 + $0xc] sm:$0xf]
        %v619 = vld [vmem:[#allocation7 + $0x10] sm:$0xf]
        %v620 = vld [vmem:[#allocation7 + $0x14] sm:$0xf]
        %v621 = vld [vmem:[#allocation7 + $0x18] sm:$0xf]
        %v622 = vld [vmem:[#allocation7 + $0x1c] sm:$0xf]
        %v623 = vld [vmem:[#allocation7 + $0x20] sm:$0xf]
        %v624 = vld [vmem:[#allocation7 + $0x24] sm:$0xf]
        %v625 = vld [vmem:[#allocation7 + $0x28] sm:$0xf]
        %v626 = vld [vmem:[#allocation7 + $0x2c] sm:$0xf]
        %v627 = vld [vmem:[#allocation7 + $0x30] sm:$0xf]
        %v628 = vld [vmem:[#allocation7 + $0x34] sm:$0xf]
        %v629 = vld [vmem:[#allocation7 + $0x38] sm:$0xf]
        %v630 = vld [vmem:[#allocation7 + $0x3c] sm:$0xf]
        %v631 = vld [vmem:[#allocation7 + $0x40] sm:$0xf]
        %v632 = vld [vmem:[#allocation7 + $0x44] sm:$0xf]
        %v633 = vld [vmem:[#allocation7 + $0x48] sm:$0xf]
        %v634 = vld [vmem:[#allocation7 + $0x4c] sm:$0xf]
        %v635 = vld [vmem:[#allocation7 + $0x50] sm:$0xf]
        %v636 = vld [vmem:[#allocation7 + $0x54] sm:$0xf]
        %v637 = vld [vmem:[#allocation7 + $0x58] sm:$0xf]
        %v638 = vld [vmem:[#allocation7 + $0x5c] sm:$0xf]
        %v639 = vld [vmem:[#allocation7 + $0x60] sm:$0xf]
        %v640 = vld [vmem:[#allocation7 + $0x64] sm:$0xf]
        %v641 = vld [vmem:[#allocation7 + $0x68] sm:$0xf]
        %v642 = vld [vmem:[#allocation7 + $0x6c] sm:$0xf]
        %v643 = vld [vmem:[#allocation7 + $0x70] sm:$0xf]
        %v644 = vld [vmem:[#allocation7 + $0x74] sm:$0xf]
        %v645 = vld [vmem:[#allocation7 + $0x78] sm:$0xf]
        %v646 = vld [vmem:[#allocation7 + $0x7c] sm:$0xf]
        %v647 = vld [vmem:[#allocation7 + $0x80] sm:$0xf]
        %v648 = vld [vmem:[#allocation7 + $0x84] sm:$0xf]
        %v649 = vld [vmem:[#allocation7 + $0x88] sm:$0xf]
        %v650 = vld [vmem:[#allocation7 + $0x8c] sm:$0xf]
        %v651 = vld [vmem:[#allocation7 + $0x90] sm:$0xf]
        %v652 = vld [vmem:[#allocation7 + $0x94] sm:$0xf]
        %v653 = vld [vmem:[#allocation7 + $0x98] sm:$0xf]
        %v654 = vld [vmem:[#allocation7 + $0x9c] sm:$0xf]
        %v655 = vld [vmem:[#allocation7 + $0xa0] sm:$0xf]
        %v656 = vld [vmem:[#allocation7 + $0xa4] sm:$0xf]
        %v657 = vld [vmem:[#allocation7 + $0xa8] sm:$0xf]
        %v658 = vld [vmem:[#allocation7 + $0xac] sm:$0xf]
        %v659 = vld [vmem:[#allocation7 + $0xb0] sm:$0xf]
        %v660 = vld [vmem:[#allocation7 + $0xb4] sm:$0xf]
        %v661 = vld [vmem:[#allocation7 + $0xb8] sm:$0xf]
        %v662 = vld [vmem:[#allocation7 + $0xbc] sm:$0xf]
        %v663 = vld [vmem:[#allocation7 + $0xc0] sm:$0xf]
        %v664 = vld [vmem:[#allocation7 + $0xc4] sm:$0xf]
        %v665 = vld [vmem:[#allocation7 + $0xc8] sm:$0xf]
        %v666 = vld [vmem:[#allocation7 + $0xcc] sm:$0xf]
        %v667 = vld [vmem:[#allocation7 + $0xd0] sm:$0xf]
        %v668 = vld [vmem:[#allocation7 + $0xd4] sm:$0xf]
        %v669 = vld [vmem:[#allocation7 + $0xd8] sm:$0xf]
        %v670 = vld [vmem:[#allocation7 + $0xdc] sm:$0xf]
        %v671 = vld [vmem:[#allocation7 + $0xe0] sm:$0xf]
        %v672 = vld [vmem:[#allocation7 + $0xe4] sm:$0xf]
        %v673 = vld [vmem:[#allocation7 + $0xe8] sm:$0xf]
        %v674 = vld [vmem:[#allocation7 + $0xec] sm:$0xf]
        %v675 = vld [vmem:[#allocation7 + $0xf0] sm:$0xf]
        %v676 = vld [vmem:[#allocation7 + $0xf4] sm:$0xf]
        %v677 = vld [vmem:[#allocation7 + $0xf8] sm:$0xf]
        %v678 = vld [vmem:[#allocation7 + $0xfc] sm:$0xf]
        %v679 = vld [vmem:[%s4] sm:$0x1]
        %v681 = vlaneseq
        %v682 = vshrl.u32 %v681, 7
        %v683 = vsub.s32 0, %v682
        %v684 = vrot.slane %v679, %v683
        %v750 = vunpack.c.l.b16 %v615
        %v751 = vunpack.c.l.b16 %v616
        %v752 = vunpack.c.l.b16 %v617
        %v753 = vunpack.c.l.b16 %v618
        %v754 = vunpack.c.l.b16 %v619
        %v755 = vunpack.c.l.b16 %v620
        %v756 = vunpack.c.l.b16 %v621
        %v757 = vunpack.c.l.b16 %v622
        %v758 = vunpack.c.l.b16 %v623
        %v759 = vunpack.c.l.b16 %v624
        %v760 = vunpack.c.l.b16 %v625
        %v761 = vunpack.c.l.b16 %v626
        %v762 = vunpack.c.l.b16 %v627
        %v763 = vunpack.c.l.b16 %v628
        %v764 = vunpack.c.l.b16 %v629
        %v765 = vunpack.c.l.b16 %v630
        %v766 = vunpack.c.l.b16 %v631
        %v767 = vunpack.c.l.b16 %v632
        %v768 = vunpack.c.l.b16 %v633
        %v769 = vunpack.c.l.b16 %v634
        %v770 = vunpack.c.l.b16 %v635
        %v771 = vunpack.c.l.b16 %v636
        %v772 = vunpack.c.l.b16 %v637
        %v773 = vunpack.c.l.b16 %v638
        %v774 = vunpack.c.l.b16 %v639
        %v775 = vunpack.c.l.b16 %v640
        %v776 = vunpack.c.l.b16 %v641
        %v777 = vunpack.c.l.b16 %v642
        %v778 = vunpack.c.l.b16 %v643
        %v779 = vunpack.c.l.b16 %v644
        %v780 = vunpack.c.l.b16 %v645
        %v781 = vunpack.c.l.b16 %v646
        %v782 = vunpack.c.l.b16 %v647
        %v783 = vunpack.c.l.b16 %v648
        %v784 = vunpack.c.l.b16 %v649
        %v785 = vunpack.c.l.b16 %v650
        %v786 = vunpack.c.l.b16 %v651
        %v787 = vunpack.c.l.b16 %v652
        %v788 = vunpack.c.l.b16 %v653
        %v789 = vunpack.c.l.b16 %v654
        %v790 = vunpack.c.l.b16 %v655
        %v791 = vunpack.c.l.b16 %v656
        %v792 = vunpack.c.l.b16 %v657
        %v793 = vunpack.c.l.b16 %v658
        %v794 = vunpack.c.l.b16 %v659
        %v795 = vunpack.c.l.b16 %v660
        %v796 = vunpack.c.l.b16 %v661
        %v797 = vunpack.c.l.b16 %v662
        %v798 = vunpack.c.l.b16 %v663
        %v799 = vunpack.c.l.b16 %v664
        %v800 = vunpack.c.l.b16 %v665
        %v801 = vunpack.c.l.b16 %v666
        %v802 = vunpack.c.l.b16 %v667
        %v803 = vunpack.c.l.b16 %v668
        %v804 = vunpack.c.l.b16 %v669
        %v805 = vunpack.c.l.b16 %v670
        %v806 = vunpack.c.l.b16 %v671
        %v807 = vunpack.c.l.b16 %v672
        %v808 = vunpack.c.l.b16 %v673
        %v809 = vunpack.c.l.b16 %v674
        %v810 = vunpack.c.l.b16 %v675
        %v811 = vunpack.c.l.b16 %v676
        %v812 = vunpack.c.l.b16 %v677
        %v813 = vunpack.c.l.b16 %v678
        %v814 = vpack.c.b16 %v751, %v750
        %v815 = vpack.c.b16 %v753, %v752
        %v816 = vpack.c.b16 %v755, %v754
        %v817 = vpack.c.b16 %v757, %v756
        %v818 = vpack.c.b16 %v759, %v758
        %v819 = vpack.c.b16 %v761, %v760
        %v820 = vpack.c.b16 %v763, %v762
        %v821 = vpack.c.b16 %v765, %v764
        %v822 = vpack.c.b16 %v767, %v766
        %v823 = vpack.c.b16 %v769, %v768
        %v824 = vpack.c.b16 %v771, %v770
        %v825 = vpack.c.b16 %v773, %v772
        %v826 = vpack.c.b16 %v775, %v774
        %v827 = vpack.c.b16 %v777, %v776
        %v828 = vpack.c.b16 %v779, %v778
        %v829 = vpack.c.b16 %v781, %v780
        %v830 = vpack.c.b16 %v783, %v782
        %v831 = vpack.c.b16 %v785, %v784
        %v832 = vpack.c.b16 %v787, %v786
        %v833 = vpack.c.b16 %v789, %v788
        %v834 = vpack.c.b16 %v791, %v790
        %v835 = vpack.c.b16 %v793, %v792
        %v836 = vpack.c.b16 %v795, %v794
        %v837 = vpack.c.b16 %v797, %v796
        %v838 = vpack.c.b16 %v799, %v798
        %v839 = vpack.c.b16 %v801, %v800
        %v840 = vpack.c.b16 %v803, %v802
        %v841 = vpack.c.b16 %v805, %v804
        %v842 = vpack.c.b16 %v807, %v806
        %v843 = vpack.c.b16 %v809, %v808
        %v844 = vpack.c.b16 %v811, %v810
        %v845 = vpack.c.b16 %v813, %v812
        %878 = vmatprep.subr.bf16.mxu0 0
        %879 = vmatpush1.bf16.msra.mxu0 %v814
        %880 = vmatprep.subr.bf16.mxu0 0
        %881 = vmatpush1.bf16.msra.mxu0 %v815
        %882 = vmatprep.subr.bf16.mxu0 0
        %883 = vmatpush1.bf16.msra.mxu0 %v816
        %884 = vmatprep.subr.bf16.mxu0 0
        %885 = vmatpush1.bf16.msra.mxu0 %v817
        %886 = vmatprep.subr.bf16.mxu0 0
        %887 = vmatpush1.bf16.msra.mxu0 %v818
        %888 = vmatprep.subr.bf16.mxu0 0
        %889 = vmatpush1.bf16.msra.mxu0 %v819
        %890 = vmatprep.subr.bf16.mxu0 0
        %891 = vmatpush1.bf16.msra.mxu0 %v820
        %892 = vmatprep.subr.bf16.mxu0 0
        %893 = vmatpush1.bf16.msra.mxu0 %v821
        %894 = vmatprep.subr.bf16.mxu0 0
        %895 = vmatpush1.bf16.msra.mxu0 %v822
        %896 = vmatprep.subr.bf16.mxu0 0
        %897 = vmatpush1.bf16.msra.mxu0 %v823
        %898 = vmatprep.subr.bf16.mxu0 0
        %899 = vmatpush1.bf16.msra.mxu0 %v824
        %900 = vmatprep.subr.bf16.mxu0 0
        %901 = vmatpush1.bf16.msra.mxu0 %v825
        %902 = vmatprep.subr.bf16.mxu0 0
        %903 = vmatpush1.bf16.msra.mxu0 %v826
        %904 = vmatprep.subr.bf16.mxu0 0
        %905 = vmatpush1.bf16.msra.mxu0 %v827
        %906 = vmatprep.subr.bf16.mxu0 0
        %907 = vmatpush1.bf16.msra.mxu0 %v828
        %908 = vmatprep.subr.bf16.mxu0 0
        %909 = vmatpush1.bf16.msra.mxu0 %v829
        %910 = vmatprep.mubr.bf16.mxu0 %v612
        %911 = vmatmul.mubr.bf16.gmra.mrb[0].mxu0 %v611
        %v912 = vpop.f32.mrb[0].mxu0
        %v913 = vadd.f32 %v684, %v912
        %v914 = vpop.f32.mrb[0].mxu0
        %v915 = vpop.f32.mrb[0].mxu0
        %v916 = vpop.f32.mrb[0].mxu0
        %917 = vdwg.mxu0
        %918 = vmatprep.subr.bf16.mxu0 0
        %919 = vmatpush1.bf16.msra.mxu0 %v830
        %920 = vmatprep.subr.bf16.mxu0 0
        %921 = vmatpush1.bf16.msra.mxu0 %v831
        %922 = vmatprep.subr.bf16.mxu0 0
        %923 = vmatpush1.bf16.msra.mxu0 %v832
        %924 = vmatprep.subr.bf16.mxu0 0
        %925 = vmatpush1.bf16.msra.mxu0 %v833
        %926 = vmatprep.subr.bf16.mxu0 0
        %927 = vmatpush1.bf16.msra.mxu0 %v834
        %928 = vmatprep.subr.bf16.mxu0 0
        %929 = vmatpush1.bf16.msra.mxu0 %v835
        %930 = vmatprep.subr.bf16.mxu0 0
        %931 = vmatpush1.bf16.msra.mxu0 %v836
        %932 = vmatprep.subr.bf16.mxu0 0
        %933 = vmatpush1.bf16.msra.mxu0 %v837
        %934 = vmatprep.subr.bf16.mxu0 0
        %935 = vmatpush1.bf16.msra.mxu0 %v838
        %936 = vmatprep.subr.bf16.mxu0 0
        %937 = vmatpush1.bf16.msra.mxu0 %v839
        %938 = vmatprep.subr.bf16.mxu0 0
        %939 = vmatpush1.bf16.msra.mxu0 %v840
        %940 = vmatprep.subr.bf16.mxu0 0
        %941 = vmatpush1.bf16.msra.mxu0 %v841
        %942 = vmatprep.subr.bf16.mxu0 0
        %943 = vmatpush1.bf16.msra.mxu0 %v842
        %944 = vmatprep.subr.bf16.mxu0 0
        %945 = vmatpush1.bf16.msra.mxu0 %v843
        %946 = vmatprep.subr.bf16.mxu0 0
        %947 = vmatpush1.bf16.msra.mxu0 %v844
        %948 = vmatprep.subr.bf16.mxu0 0
        %949 = vmatpush1.bf16.msra.mxu0 %v845
        %950 = vmatprep.mubr.bf16.mxu0 %v614
        %951 = vmatmul.mubr.bf16.gmra.mrb[0].mxu0 %v613
        %v952 = vpop.f32.mrb[0].mxu0
        %v953 = vadd.f32 %v913, %v952
        %v954 = vpop.f32.mrb[0].mxu0
        %v955 = vpop.f32.mrb[0].mxu0
        %v956 = vpop.f32.mrb[0].mxu0
        %957 = vdwg.mxu0
        %958 = vst [vmem:[%s268] sm:$0xff] %v953
        %s959 = sand.u32 %s141, 1
        %s960 = scalar_lea.sflag [#allocation4], %s959
        %s961 = sand.u32 %s141, 1
        %s962 = smul.addr %s961, 8
        %s963 = scalar_lea.vmem [#allocation8], %s962
        // Predicated region
        $region53: #{tpu_custom_call.1} parent=39 // pred_check
          %p964 = pneg %p151
        $region54: #{tpu_custom_call.1} parent=39 // pred_check_branch
          %966 = sbr.rel (%p964) target = $region56
        $region55: #{tpu_custom_call.1} parent=39 // pred_region
          %s968 = ssub.s32 128, 128
          %969 = vsyncadd %s960, %s968
          %s970 = smul.addr %s23, 128
          %s971 = scalar_lea.hbm %s5, %s970
          %s973 = sshll.u32 %s963, 4
          %s974 = int_to_ptr.vmem [resolvable:$true] %s973
          %976 = dma.vmem_to_hbm [thread:$0]  %s974, 128, %s971, %s960
        $region56: #{tpu_custom_call.1} parent=39 // pred_fallthru
          _
      $region40: #{tpu_custom_call.1} parent=5 // pred_fallthru
        _
      %p977 = scmp.le.s32.totalorder 2, %s18
      // Predicated region
      $region57: #{tpu_custom_call.1} parent=5 // pred_check
        %p978 = pneg %p977
      $region58: #{tpu_custom_call.1} parent=5 // pred_check_branch
        %980 = sbr.rel (%p978) target = $region60
      $region59: #{tpu_custom_call.1} parent=5 // pred_region
        %s981 = ssub.s32 %s18, 2
        // Predicated region
        $region61: #{tpu_custom_call.1} parent=59 // pred_check
          %p982 = pneg %p157
        $region62: #{tpu_custom_call.1} parent=59 // pred_check_branch
          %984 = sbr.rel (%p982) target = $region64
        $region63: #{tpu_custom_call.1} parent=59 // pred_region
          %s985 = sand.u32 %s142, 1
          %s986 = scalar_lea.sflag [#allocation4], %s985
          %s987 = sand.u32 %s142, 1
          %s988 = smul.addr %s987, 8
          %s989 = scalar_lea.vmem [#allocation8], %s988
          %990 = dma.done %s986, 128
        $region64: #{tpu_custom_call.1} parent=59 // pred_fallthru
          _
      $region60: #{tpu_custom_call.1} parent=5 // pred_fallthru
        _
    $region6: #{tpu_custom_call.1} parent=1 // loop_footer
      %s22 = sadd.s32 1, %s18
    $region7: #{tpu_custom_call.1} parent=1 // loop_footer_branch
      %17 = sbr.rel target = $region3
    $region8: #{tpu_custom_call.1} parent=1 // loop_exit
      _
    %991 = vsyncpa [#allocation3], 1
    %s992 = scalar_lea.sflag [#allocation3], 1
    %993 = vsyncpa %s992, 1
    %994 = vsyncpa [#allocation6], 1
    %995 = vsyncpa [#allocation4], 1
    %s996 = scalar_lea.sflag [#allocation4], 1
    %997 = vsyncpa %s996, 1

</llo_original>
